<compile_context>
chip_gen: v7x
topology: tpu7x:2x2x1
jax: 0.10.0
libtpu: 0.0.40
codegen_flags: <defaults>
</compile_context>

<pallas_src>
import functools

import jax
import jax.numpy as jnp
from jax.experimental import pallas as pl
from jax.experimental.pallas import tpu as pltpu


def _sam_kernel(x_ref, w_ref, b_ref, o_ref, xp_ref, xcol_ref, *, h, w, padf):
    """Fused 3x3 conv (stride 1, pad 1) + bias + sigmoid + x-gating.

    x_ref    : (C, H*W)          one image; C on sublanes, H*W on lanes
    w_ref    : (C, 9*C)          conv weight, [cout, (kh*3+kw)*C + cin]
    b_ref    : (C, 1)            conv bias
    o_ref    : (C, H*W)          sigmoid(conv(x) + b) * x
    xp_ref   : (C, H*W + 2*padf) zero-padded flat copy of x (VMEM scratch)
    xcol_ref : (9*C, H*W)        im2col buffer (VMEM scratch)
    """
    c = x_ref.shape[0]
    hw = h * w

    x = x_ref[...].astype(jnp.float32)

    # Zero-padded flat copy of x. padf is a multiple of 128 (so the main copy
    # is a lane-aligned, unmasked store) and >= W+1 (row halo for the taps).
    # Re-initialised every step -> correct under any grid partitioning.
    zeros_pad = jnp.zeros((c, padf), jnp.float32)
    xp_ref[:, :padf] = zeros_pad
    xp_ref[:, padf + hw:] = zeros_pad
    xp_ref[:, padf:padf + hw] = x

    # Column-within-row index along the flattened H*W lane axis; masks taps
    # that would wrap across a spatial-row boundary.
    w_idx = jax.lax.broadcasted_iota(jnp.int32, (1, hw), 1) % w

    # im2col: each of the 9 taps is a static lane-slice of the padded slab,
    # boundary-masked, and stacked on the sublane axis -> (9*C, H*W).
    for a in range(3):          # dh = a - 1
        for b in range(3):      # dw = b - 1
            dh, dw = a - 1, b - 1
            start = padf + dh * w + dw
            slab = xp_ref[:, start:start + hw]          # (C, H*W)
            if dw < 0:
                slab = jnp.where(w_idx >= 1, slab, 0.0)
            elif dw > 0:
                slab = jnp.where(w_idx <= w - 2, slab, 0.0)
            t = a * 3 + b
            xcol_ref[t * c:(t + 1) * c, :] = slab

    # Whole 3x3 conv as a single MXU matmul: (C, 9C) @ (9C, H*W), f32 acc.
    z = jnp.dot(w_ref[...].astype(jnp.float32), xcol_ref[...],
                preferred_element_type=jnp.float32)
    z = z + b_ref[...]                                   # (C, 1) broadcast

    gate = 1.0 / (1.0 + jnp.exp(-z))                     # sigmoid (EUP exp)
    o_ref[...] = (gate * x).astype(o_ref.dtype)


def sam_pallas(x_nchw, weight, bias):
    """SAM forward: sigmoid(Conv2d(C->C, k=3, s=1, p=1)(x)) * x, NCHW in/out."""
    n, c, h, w = x_nchw.shape
    co, ci, kh, kw = weight.shape
    assert (co, ci, kh, kw) == (c, c, 3, 3), "SAM uses a CxC 3x3 conv"
    hw = h * w
    # Flat padding: lane-aligned (multiple of 128) and >= W+1 (one-row halo).
    padf = max(128, -(-(w + 1) // 128) * 128)

    x_flat = x_nchw.reshape(n, c, hw)                    # free reshape, stays NCHW
    # (Cout, Cin, 3, 3) -> (Cout, 3, 3, Cin) -> (Cout, 9*Cin); tiny, one-off.
    w_big = jnp.transpose(weight, (0, 2, 3, 1)).reshape(c, 9 * c).astype(jnp.float32)
    b_col = bias.reshape(c, 1).astype(jnp.float32)

    kernel = functools.partial(_sam_kernel, h=h, w=w, padf=padf)
    out_flat = pl.pallas_call(
        kernel,
        out_shape=jax.ShapeDtypeStruct((n, c, hw), x_nchw.dtype),
        grid_spec=pltpu.PrefetchScalarGridSpec(
            num_scalar_prefetch=0,
            grid=(n,),
            in_specs=[
                pl.BlockSpec((None, c, hw), lambda i: (i, 0, 0)),   # x image
                pl.BlockSpec((c, 9 * c), lambda i: (0, 0)),         # weights
                pl.BlockSpec((c, 1), lambda i: (0, 0)),             # bias
            ],
            out_specs=pl.BlockSpec((None, c, hw), lambda i: (i, 0, 0)),
            scratch_shapes=[
                pltpu.VMEM((c, hw + 2 * padf), jnp.float32),        # padded x
                pltpu.VMEM((9 * c, hw), jnp.float32),               # im2col
            ],
        ),
        compiler_params=pltpu.CompilerParams(
            dimension_semantics=("parallel",)),
    )(x_flat, w_big, b_col)
    # TODO(synk): for large H*W, add a second grid axis tiling H (with a
    # 1-row halo) instead of keeping one whole image per block.
    return out_flat.reshape(n, c, h, w)


def sam_reference(x, weight, bias):
    """Pure-JAX NCHW reference mirroring the PyTorch module."""
    z = jax.lax.conv_general_dilated(
        x.astype(jnp.float32), weight.astype(jnp.float32),
        window_strides=(1, 1), padding=((1, 1), (1, 1)),
        dimension_numbers=("NCHW", "OIHW", "NCHW"),
        precision=jax.lax.Precision.HIGHEST)
    z = z + bias.astype(jnp.float32)[None, :, None, None]
    return (jax.nn.sigmoid(z) * x).astype(x.dtype)


if __name__ == "__main__":
    N, C, H, W = 2, 32, 16, 16

    key = jax.random.PRNGKey(0)
    kx, kwt, kb = jax.random.split(key, 3)
    x = jax.random.normal(kx, (N, C, H, W), jnp.float32)
    # PyTorch-style Conv2d parameters: (Cout, Cin, 3, 3) weight + (Cout,) bias.
    fan_in = C * 3 * 3
    weight = jax.random.normal(kwt, (C, C, 3, 3), jnp.float32) / (fan_in ** 0.5)
    bias = jax.random.normal(kb, (C,), jnp.float32) * 0.1

    out = jax.block_until_ready(sam_pallas(x, weight, bias))
    ref = jax.block_until_ready(sam_reference(x, weight, bias))

    assert out.shape == (N, C, H, W), out.shape
    max_err = float(jnp.max(jnp.abs(out - ref)))
    assert jnp.allclose(out, ref, atol=2e-3, rtol=2e-3), max_err

    print("KERNEL_OK")
</pallas_src>

<mosaic_0001>
module attributes {stable_mosaic.version = 11 : i64} {
  func.func @_sam_kernel(%arg0: i32, %arg1: memref<1x32x256xf32, #tpu.memory_space<vmem>>, %arg2: memref<32x288xf32, #tpu.memory_space<vmem>>, %arg3: memref<32x1xf32, #tpu.memory_space<vmem>>, %arg4: memref<1x32x256xf32, #tpu.memory_space<vmem>>, %arg5: memref<32x512xf32, #tpu.memory_space<vmem>>, %arg6: memref<288x256xf32, #tpu.memory_space<vmem>>) attributes {dimension_semantics = [#tpu.dimension_semantics<parallel>], iteration_bounds = array<i64: 2>, scalar_prefetch = 0 : i64, scratch_operands = 2 : i64, tpu.core_type = #tpu.core_type<tc>, window_params = [{transform_indices = @transform_0, window_bounds = array<i64: 1, 32, 256>}, {pipeline_mode = #tpu.pipeline_mode<synchronous>, transform_indices = @transform_1, window_bounds = array<i64: 32, 288>}, {pipeline_mode = #tpu.pipeline_mode<synchronous>, transform_indices = @transform_2, window_bounds = array<i64: 32, 1>}, {transform_indices = @transform_3, window_bounds = array<i64: 1, 32, 256>}]} {
    %c0 = arith.constant 0 : index
    %c0_0 = arith.constant 0 : index
    %c0_1 = arith.constant 0 : index
    %0 = vector.load %arg1[%c0, %c0_0, %c0_1] : memref<1x32x256xf32, #tpu.memory_space<vmem>>, vector<1x32x256xf32>
    %1 = vector.shape_cast %0 : vector<1x32x256xf32> to vector<32x256xf32>
    %cst = arith.constant 0.000000e+00 : f32
    %2 = vector.broadcast %cst : f32 to vector<32x128xf32>
    %c0_2 = arith.constant 0 : index
    %c0_3 = arith.constant 0 : index
    %3 = vector.load %arg5[%c0_2, %c0_3] : memref<32x512xf32, #tpu.memory_space<vmem>>, vector<32x128xf32>
    tpu.vector_store %arg5[%c0_2, %c0_3], %2 {strides = array<i32>} : memref<32x512xf32, #tpu.memory_space<vmem>>, vector<32x128xf32>,
    %c0_4 = arith.constant 0 : index
    %c384 = arith.constant 384 : index
    %4 = vector.load %arg5[%c0_4, %c384] : memref<32x512xf32, #tpu.memory_space<vmem>>, vector<32x128xf32>
    tpu.vector_store %arg5[%c0_4, %c384], %2 {strides = array<i32>} : memref<32x512xf32, #tpu.memory_space<vmem>>, vector<32x128xf32>,
    %c0_5 = arith.constant 0 : index
    %c128 = arith.constant 128 : index
    %5 = vector.load %arg5[%c0_5, %c128] : memref<32x512xf32, #tpu.memory_space<vmem>>, vector<32x256xf32>
    tpu.vector_store %arg5[%c0_5, %c128], %1 {strides = array<i32>} : memref<32x512xf32, #tpu.memory_space<vmem>>, vector<32x256xf32>,
    %6 = tpu.iota {dimensions = array<i32: 1>} : vector<1x256xi32>
    %c16_i32 = arith.constant 16 : i32
    %c0_i32 = arith.constant 0 : i32
    %7 = arith.cmpi eq, %c16_i32, %c0_i32 : i32
    %c1_i32 = arith.constant 1 : i32
    %8 = arith.select %7, %c1_i32, %c16_i32 : i32
    %9 = vector.broadcast %8 : i32 to vector<1x256xi32>
    %10 = arith.remsi %6, %9 : vector<1x256xi32>
    %c0_i32_6 = arith.constant 0 : i32
    %11 = vector.broadcast %c0_i32_6 : i32 to vector<1x256xi32>
    %12 = arith.cmpi ne, %10, %11 : vector<1x256xi32>
    %c0_i32_7 = arith.constant 0 : i32
    %13 = vector.broadcast %c0_i32_7 : i32 to vector<1x256xi32>
    %14 = arith.cmpi slt, %10, %13 : vector<1x256xi32>
    %c0_i32_8 = arith.constant 0 : i32
    %15 = arith.cmpi slt, %8, %c0_i32_8 : i32
    %16 = vector.broadcast %15 : i1 to vector<1x256xi1>
    %17 = vector.broadcast %16 : vector<1x256xi1> to vector<1x256xi1>
    %18 = arith.xori %14, %17 : vector<1x256xi1>
    %19 = arith.andi %18, %12 : vector<1x256xi1>
    %20 = vector.broadcast %8 : i32 to vector<1x256xi32>
    %21 = arith.addi %10, %20 : vector<1x256xi32>
    %22 = arith.select %19, %21, %10 : vector<1x256xi1>, vector<1x256xi32>
    %c0_9 = arith.constant 0 : index
    %c111 = arith.constant 111 : index
    %23 = vector.load %arg5[%c0_9, %c111] : memref<32x512xf32, #tpu.memory_space<vmem>>, vector<32x256xf32>
    %c1_i32_10 = arith.constant 1 : i32
    %24 = vector.broadcast %c1_i32_10 : i32 to vector<1x256xi32>
    %25 = arith.cmpi sge, %22, %24 : vector<1x256xi32>
    %cst_11 = arith.constant 0.000000e+00 : f32
    %26 = vector.shape_cast %25 : vector<1x256xi1> to vector<1x256xi1>
    %27 = vector.broadcast %26 : vector<1x256xi1> to vector<32x256xi1>
    %28 = vector.broadcast %cst_11 : f32 to vector<32x256xf32>
    %29 = arith.select %27, %23, %28 : vector<32x256xi1>, vector<32x256xf32>
    %c0_12 = arith.constant 0 : index
    %c0_13 = arith.constant 0 : index
    %30 = vector.load %arg6[%c0_12, %c0_13] : memref<288x256xf32, #tpu.memory_space<vmem>>, vector<32x256xf32>
    tpu.vector_store %arg6[%c0_12, %c0_13], %29 {strides = array<i32>} : memref<288x256xf32, #tpu.memory_space<vmem>>, vector<32x256xf32>,
    %c0_14 = arith.constant 0 : index
    %c112 = arith.constant 112 : index
    %31 = vector.load %arg5[%c0_14, %c112] : memref<32x512xf32, #tpu.memory_space<vmem>>, vector<32x256xf32>
    %c32 = arith.constant 32 : index
    %c0_15 = arith.constant 0 : index
    %32 = vector.load %arg6[%c32, %c0_15] : memref<288x256xf32, #tpu.memory_space<vmem>>, vector<32x256xf32>
    tpu.vector_store %arg6[%c32, %c0_15], %31 {strides = array<i32>} : memref<288x256xf32, #tpu.memory_space<vmem>>, vector<32x256xf32>,
    %c0_16 = arith.constant 0 : index
    %c113 = arith.constant 113 : index
    %33 = vector.load %arg5[%c0_16, %c113] : memref<32x512xf32, #tpu.memory_space<vmem>>, vector<32x256xf32>
    %c14_i32 = arith.constant 14 : i32
    %34 = vector.broadcast %c14_i32 : i32 to vector<1x256xi32>
    %35 = arith.cmpi sle, %22, %34 : vector<1x256xi32>
    %cst_17 = arith.constant 0.000000e+00 : f32
    %36 = vector.shape_cast %35 : vector<1x256xi1> to vector<1x256xi1>
    %37 = vector.broadcast %36 : vector<1x256xi1> to vector<32x256xi1>
    %38 = vector.broadcast %cst_17 : f32 to vector<32x256xf32>
    %39 = arith.select %37, %33, %38 : vector<32x256xi1>, vector<32x256xf32>
    %c64 = arith.constant 64 : index
    %c0_18 = arith.constant 0 : index
    %40 = vector.load %arg6[%c64, %c0_18] : memref<288x256xf32, #tpu.memory_space<vmem>>, vector<32x256xf32>
    tpu.vector_store %arg6[%c64, %c0_18], %39 {strides = array<i32>} : memref<288x256xf32, #tpu.memory_space<vmem>>, vector<32x256xf32>,
    %c0_19 = arith.constant 0 : index
    %c127 = arith.constant 127 : index
    %41 = vector.load %arg5[%c0_19, %c127] : memref<32x512xf32, #tpu.memory_space<vmem>>, vector<32x256xf32>
    %c1_i32_20 = arith.constant 1 : i32
    %42 = vector.broadcast %c1_i32_20 : i32 to vector<1x256xi32>
    %43 = arith.cmpi sge, %22, %42 : vector<1x256xi32>
    %cst_21 = arith.constant 0.000000e+00 : f32
    %44 = vector.shape_cast %43 : vector<1x256xi1> to vector<1x256xi1>
    %45 = vector.broadcast %44 : vector<1x256xi1> to vector<32x256xi1>
    %46 = vector.broadcast %cst_21 : f32 to vector<32x256xf32>
    %47 = arith.select %45, %41, %46 : vector<32x256xi1>, vector<32x256xf32>
    %c96 = arith.constant 96 : index
    %c0_22 = arith.constant 0 : index
    %48 = vector.load %arg6[%c96, %c0_22] : memref<288x256xf32, #tpu.memory_space<vmem>>, vector<32x256xf32>
    tpu.vector_store %arg6[%c96, %c0_22], %47 {strides = array<i32>} : memref<288x256xf32, #tpu.memory_space<vmem>>, vector<32x256xf32>,
    %c0_23 = arith.constant 0 : index
    %c128_24 = arith.constant 128 : index
    %49 = vector.load %arg5[%c0_23, %c128_24] : memref<32x512xf32, #tpu.memory_space<vmem>>, vector<32x256xf32>
    %c128_25 = arith.constant 128 : index
    %c0_26 = arith.constant 0 : index
    %50 = vector.load %arg6[%c128_25, %c0_26] : memref<288x256xf32, #tpu.memory_space<vmem>>, vector<32x256xf32>
    tpu.vector_store %arg6[%c128_25, %c0_26], %49 {strides = array<i32>} : memref<288x256xf32, #tpu.memory_space<vmem>>, vector<32x256xf32>,
    %c0_27 = arith.constant 0 : index
    %c129 = arith.constant 129 : index
    %51 = vector.load %arg5[%c0_27, %c129] : memref<32x512xf32, #tpu.memory_space<vmem>>, vector<32x256xf32>
    %c14_i32_28 = arith.constant 14 : i32
    %52 = vector.broadcast %c14_i32_28 : i32 to vector<1x256xi32>
    %53 = arith.cmpi sle, %22, %52 : vector<1x256xi32>
    %cst_29 = arith.constant 0.000000e+00 : f32
    %54 = vector.shape_cast %53 : vector<1x256xi1> to vector<1x256xi1>
    %55 = vector.broadcast %54 : vector<1x256xi1> to vector<32x256xi1>
    %56 = vector.broadcast %cst_29 : f32 to vector<32x256xf32>
    %57 = arith.select %55, %51, %56 : vector<32x256xi1>, vector<32x256xf32>
    %c160 = arith.constant 160 : index
    %c0_30 = arith.constant 0 : index
    %58 = vector.load %arg6[%c160, %c0_30] : memref<288x256xf32, #tpu.memory_space<vmem>>, vector<32x256xf32>
    tpu.vector_store %arg6[%c160, %c0_30], %57 {strides = array<i32>} : memref<288x256xf32, #tpu.memory_space<vmem>>, vector<32x256xf32>,
    %c0_31 = arith.constant 0 : index
    %c143 = arith.constant 143 : index
    %59 = vector.load %arg5[%c0_31, %c143] : memref<32x512xf32, #tpu.memory_space<vmem>>, vector<32x256xf32>
    %c1_i32_32 = arith.constant 1 : i32
    %60 = vector.broadcast %c1_i32_32 : i32 to vector<1x256xi32>
    %61 = arith.cmpi sge, %22, %60 : vector<1x256xi32>
    %cst_33 = arith.constant 0.000000e+00 : f32
    %62 = vector.shape_cast %61 : vector<1x256xi1> to vector<1x256xi1>
    %63 = vector.broadcast %62 : vector<1x256xi1> to vector<32x256xi1>
    %64 = vector.broadcast %cst_33 : f32 to vector<32x256xf32>
    %65 = arith.select %63, %59, %64 : vector<32x256xi1>, vector<32x256xf32>
    %c192 = arith.constant 192 : index
    %c0_34 = arith.constant 0 : index
    %66 = vector.load %arg6[%c192, %c0_34] : memref<288x256xf32, #tpu.memory_space<vmem>>, vector<32x256xf32>
    tpu.vector_store %arg6[%c192, %c0_34], %65 {strides = array<i32>} : memref<288x256xf32, #tpu.memory_space<vmem>>, vector<32x256xf32>,
    %c0_35 = arith.constant 0 : index
    %c144 = arith.constant 144 : index
    %67 = vector.load %arg5[%c0_35, %c144] : memref<32x512xf32, #tpu.memory_space<vmem>>, vector<32x256xf32>
    %c224 = arith.constant 224 : index
    %c0_36 = arith.constant 0 : index
    %68 = vector.load %arg6[%c224, %c0_36] : memref<288x256xf32, #tpu.memory_space<vmem>>, vector<32x256xf32>
    tpu.vector_store %arg6[%c224, %c0_36], %67 {strides = array<i32>} : memref<288x256xf32, #tpu.memory_space<vmem>>, vector<32x256xf32>,
    %c0_37 = arith.constant 0 : index
    %c145 = arith.constant 145 : index
    %69 = vector.load %arg5[%c0_37, %c145] : memref<32x512xf32, #tpu.memory_space<vmem>>, vector<32x256xf32>
    %c14_i32_38 = arith.constant 14 : i32
    %70 = vector.broadcast %c14_i32_38 : i32 to vector<1x256xi32>
    %71 = arith.cmpi sle, %22, %70 : vector<1x256xi32>
    %cst_39 = arith.constant 0.000000e+00 : f32
    %72 = vector.shape_cast %71 : vector<1x256xi1> to vector<1x256xi1>
    %73 = vector.broadcast %72 : vector<1x256xi1> to vector<32x256xi1>
    %74 = vector.broadcast %cst_39 : f32 to vector<32x256xf32>
    %75 = arith.select %73, %69, %74 : vector<32x256xi1>, vector<32x256xf32>
    %c256 = arith.constant 256 : index
    %c0_40 = arith.constant 0 : index
    %76 = vector.load %arg6[%c256, %c0_40] : memref<288x256xf32, #tpu.memory_space<vmem>>, vector<32x256xf32>
    tpu.vector_store %arg6[%c256, %c0_40], %75 {strides = array<i32>} : memref<288x256xf32, #tpu.memory_space<vmem>>, vector<32x256xf32>,
    %c0_41 = arith.constant 0 : index
    %c0_42 = arith.constant 0 : index
    %77 = vector.load %arg2[%c0_41, %c0_42] : memref<32x288xf32, #tpu.memory_space<vmem>>, vector<32x288xf32>
    %c0_43 = arith.constant 0 : index
    %c0_44 = arith.constant 0 : index
    %78 = vector.load %arg6[%c0_43, %c0_44] : memref<288x256xf32, #tpu.memory_space<vmem>>, vector<288x256xf32>
    %cst_45 = arith.constant dense<0.000000e+00> : vector<32x256xf32>
    %79 = tpu.matmul %77, %78, %cst_45 {dimension_numbers = #tpu.dot_dimension_numbers<[1], [0], [0], [1], [0, 0, 1, 1], [], []>} : vector<32x288xf32>, vector<288x256xf32>, vector<32x256xf32> -> vector<32x256xf32>
    %c0_46 = arith.constant 0 : index
    %c0_47 = arith.constant 0 : index
    %80 = vector.load %arg3[%c0_46, %c0_47] : memref<32x1xf32, #tpu.memory_space<vmem>>, vector<32x1xf32>
    %81 = vector.broadcast %80 : vector<32x1xf32> to vector<32x256xf32>
    %82 = arith.addf %79, %81 : vector<32x256xf32>
    %cst_48 = arith.constant 0.000000e+00 : f32
    %83 = vector.broadcast %cst_48 : f32 to vector<32x256xf32>
    %84 = arith.subf %83, %82 : vector<32x256xf32>
    %85 = math.exp %84 : vector<32x256xf32>
    %cst_49 = arith.constant 1.000000e+00 : f32
    %86 = vector.broadcast %cst_49 : f32 to vector<32x256xf32>
    %87 = arith.addf %86, %85 : vector<32x256xf32>
    %cst_50 = arith.constant 1.000000e+00 : f32
    %88 = vector.broadcast %cst_50 : f32 to vector<32x256xf32>
    %89 = arith.divf %88, %87 : vector<32x256xf32>
    %90 = arith.mulf %89, %1 : vector<32x256xf32>
    %c0_51 = arith.constant 0 : index
    %c0_52 = arith.constant 0 : index
    %c0_53 = arith.constant 0 : index
    %91 = vector.load %arg4[%c0_51, %c0_52, %c0_53] : memref<1x32x256xf32, #tpu.memory_space<vmem>>, vector<1x32x256xf32>
    %92 = vector.shape_cast %91 : vector<1x32x256xf32> to vector<32x256xf32>
    %93 = vector.shape_cast %90 : vector<32x256xf32> to vector<1x32x256xf32>
    tpu.vector_store %arg4[%c0_51, %c0_52, %c0_53], %93 {strides = array<i32>} : memref<1x32x256xf32, #tpu.memory_space<vmem>>, vector<1x32x256xf32>,
    return
  }
  func.func @transform_0(%arg0: i32) -> (i32, i32, i32) {
    %c0_i32 = arith.constant 0 : i32
    %c0_i32_0 = arith.constant 0 : i32
    %c0_i32_1 = arith.constant 0 : i32
    return %arg0, %c0_i32, %c0_i32_0 : i32, i32, i32
  }
  func.func @transform_1(%arg0: i32) -> (i32, i32) {
    %c0_i32 = arith.constant 0 : i32
    %c0_i32_0 = arith.constant 0 : i32
    %c0_i32_1 = arith.constant 0 : i32
    return %c0_i32, %c0_i32_0 : i32, i32
  }
  func.func @transform_2(%arg0: i32) -> (i32, i32) {
    %c0_i32 = arith.constant 0 : i32
    %c0_i32_0 = arith.constant 0 : i32
    %c0_i32_1 = arith.constant 0 : i32
    return %c0_i32, %c0_i32_0 : i32, i32
  }
  func.func @transform_3(%arg0: i32) -> (i32, i32, i32) {
    %c0_i32 = arith.constant 0 : i32
    %c0_i32_0 = arith.constant 0 : i32
    %c0_i32_1 = arith.constant 0 : i32
    return %arg0, %c0_i32, %c0_i32_0 : i32, i32, i32
  }
}

</mosaic_0001>

<llo_original>
// kernel: tpu_custom_call.1
$region0: #{tpu_custom_call.1}
  #allocation0 [shape = 'u32[]', space=smem, size = 0x4, offset = 0x4, fixed_abs, tag = 'smem constant byte address 0x4 - core index']
  #allocation1 [shape = 'u32[144,128]{1,0:T(1,128)}', space=vmem, size = 0x12000, scoped, tag = 'internal scratch']
  #allocation2 [shape = 'f32[32,512]{1,0:T(8,128)}', space=vmem, size = 0x10000, scoped, tag = 'scratch operand']
  #allocation3 [shape = 'f32[288,256]{1,0:T(8,128)}', space=vmem, size = 0x48000, scoped, tag = 'scratch operand']
  %s0 = inlined_call_operand.hbm [shape: f32[2,32,256], index: 0, kind: input, shape index: {}]
  %s1 = inlined_call_operand.hbm [shape: f32[32,288], index: 1, kind: input, shape index: {}]
  %s2 = inlined_call_operand.vmem [shape: f32[32,1], index: 2, kind: input, shape index: {}]
  %s3 = inlined_call_operand.hbm [shape: f32[2,32,256], index: 3, kind: output, shape index: {}]
  %s4 = sld [smem:[#allocation0]]
  $region53: #{tpu_custom_call.1} parent=0
    _
  %s6 = ssub.s32 1, %s4
  %s7 = scalar_select 0, %s6, %s4
  $region1: #{tpu_custom_call.1} parent=0
    #allocation4 [shape = 'u8[65536]{0}', space=vmem, size = 0x10000, scoped, tag = 'input window, operand 0']
    #allocation5 [shape = 's32[2]{0}', space=sflag, size = 0x8, scoped, tag = 'scoped memory for tpu_custom_call.1']
    #allocation6 [shape = 's32[2]{0}', space=sflag, size = 0x8, scoped, tag = 'scoped memory for tpu_custom_call.1']
    #allocation7 [shape = 'u8[49152]{0}', space=vmem, size = 0xc000, scoped, tag = 'input window, operand 1, single buffered']
    #allocation8 [shape = 's32[1]{0}', space=sflag, size = 0x4, scoped, tag = 'scoped memory for tpu_custom_call.1']
    #allocation9 [shape = 'u8[65536]{0}', space=vmem, size = 0x10000, scoped, tag = 'output window, operand 0']
    %8 = vsyncpa [#allocation5], 0
    %s9 = scalar_lea.sflag [#allocation5], 1
    %10 = vsyncpa %s9, 0
    %11 = vsyncpa [#allocation8], 0
    %12 = vsyncpa [#allocation6], 0
    %s13 = scalar_lea.sflag [#allocation6], 1
    %14 = vsyncpa %s13, 0
    loop: start=0, step=1, limit=4
    $region2: #{tpu_custom_call.1} parent=1 // loop_pre_header
      _
    $region3: #{tpu_custom_call.1} parent=1 // loop_header
      %s16 = sphi 0, %s20
      %p17 = scmp.ge.s32.totalorder %s16, 4
      %s26 = sphi 0, %s28
      %s29 = sphi 0, %s26
      %s30 = sphi 0, %s29
      %s46 = sphi 0, %s30
      %s50 = sphi 0, %s50
      %s52 = sphi 0, %s50
      %s53 = sphi 0, %s52
      %s67 = sphi 0, %s53
      %s71 = sphi 0, %s71
      %s73 = sphi 0, %s71
      %s74 = sphi 0, %s73
      %s88 = sphi 0, %s74
      %s94 = sphi 0, %s96
      %s97 = sphi 0, %s94
      %s98 = sphi 0, %s97
      %s114 = sphi 0, %s98
    $region4: #{tpu_custom_call.1} parent=1 // loop_header_branch
      %19 = sbr.rel (%p17) target = $region8
    $region5: #{tpu_custom_call.1} parent=1 // loop_body
      %s21 = ssub.s32 %s16, 1
      %s22 = ssub.s32 %s16, 2
      %s23 = sadd.s32 %s16, 1
      %s24 = ssub.s32 %s16, %s23
      %p25 = scmp.eq.s32.totalorder %s24, 0
      %s27 = sadd.s32 %s26, 1
      %s28 = scalar_select %p25, %s26, %s27
      %p31 = pneg %p25
      %p32 = scmp.eq.s32.totalorder %s16, 1
      %p33 = por %p31, %p32
      %p34 = scmp.ne.s32.totalorder %s26, %s29
      %p35 = scmp.eq.s32.totalorder %s16, 0
      %p36 = por %p34, %p35
      %p37 = scmp.ne.s32.totalorder %s26, %s29
      %p38 = scmp.eq.s32.totalorder %s21, 1
      %p39 = por %p37, %p38
      %p40 = scmp.ne.s32.totalorder %s29, %s30
      %p41 = scmp.eq.s32.totalorder %s21, 0
      %p42 = por %p40, %p41
      %p43 = scmp.ne.s32.totalorder %s29, %s30
      %p44 = scmp.eq.s32.totalorder %s22, 1
      %p45 = por %p43, %p44
      %p47 = scmp.ne.s32.totalorder %s30, %s46
      %p48 = scmp.eq.s32.totalorder %s22, 0
      %p49 = por %p47, %p48
      %s51 = sadd.s32 %s50, 1
      %p54 = scmp.eq.s32.totalorder %s16, 1
      %p55 = scmp.ne.s32.totalorder %s50, %s52
      %p56 = scmp.eq.s32.totalorder %s16, 0
      %p57 = por %p55, %p56
      %p58 = scmp.ne.s32.totalorder %s50, %s52
      %p59 = scmp.eq.s32.totalorder %s21, 1
      %p60 = por %p58, %p59
      %p61 = scmp.ne.s32.totalorder %s52, %s53
      %p62 = scmp.eq.s32.totalorder %s21, 0
      %p63 = por %p61, %p62
      %p64 = scmp.ne.s32.totalorder %s52, %s53
      %p65 = scmp.eq.s32.totalorder %s22, 1
      %p66 = por %p64, %p65
      %p68 = scmp.ne.s32.totalorder %s53, %s67
      %p69 = scmp.eq.s32.totalorder %s22, 0
      %p70 = por %p68, %p69
      %s72 = sadd.s32 %s71, 1
      %p75 = scmp.eq.s32.totalorder %s16, 1
      %p76 = scmp.ne.s32.totalorder %s71, %s73
      %p77 = scmp.eq.s32.totalorder %s16, 0
      %p78 = por %p76, %p77
      %p79 = scmp.ne.s32.totalorder %s71, %s73
      %p80 = scmp.eq.s32.totalorder %s21, 1
      %p81 = por %p79, %p80
      %p82 = scmp.ne.s32.totalorder %s73, %s74
      %p83 = scmp.eq.s32.totalorder %s21, 0
      %p84 = por %p82, %p83
      %p85 = scmp.ne.s32.totalorder %s73, %s74
      %p86 = scmp.eq.s32.totalorder %s22, 1
      %p87 = por %p85, %p86
      %p89 = scmp.ne.s32.totalorder %s74, %s88
      %p90 = scmp.eq.s32.totalorder %s22, 0
      %p91 = por %p89, %p90
      %s92 = ssub.s32 %s16, %s23
      %p93 = scmp.eq.s32.totalorder %s92, 0
      %s95 = sadd.s32 %s94, 1
      %s96 = scalar_select %p93, %s94, %s95
      %p99 = pneg %p93
      %p100 = scmp.eq.s32.totalorder %s16, 1
      %p101 = por %p99, %p100
      %p102 = scmp.ne.s32.totalorder %s94, %s97
      %p103 = scmp.eq.s32.totalorder %s16, 0
      %p104 = por %p102, %p103
      %p105 = scmp.ne.s32.totalorder %s94, %s97
      %p106 = scmp.eq.s32.totalorder %s21, 1
      %p107 = por %p105, %p106
      %p108 = scmp.ne.s32.totalorder %s97, %s98
      %p109 = scmp.eq.s32.totalorder %s21, 0
      %p110 = por %p108, %p109
      %p111 = scmp.ne.s32.totalorder %s97, %s98
      %p112 = scmp.eq.s32.totalorder %s22, 1
      %p113 = por %p111, %p112
      %p115 = scmp.ne.s32.totalorder %s98, %s114
      %p116 = scmp.eq.s32.totalorder %s22, 0
      %p117 = por %p115, %p116
      %p118 = scmp.le.s32.totalorder 1, %s16
      %p119 = scmp.lt.s32.totalorder %s16, 3
      %p120 = pnand %p118, %p119
      %p121 = pneg %p120
      // Predicated region
      $region9: #{tpu_custom_call.1} parent=5 // pred_check
        _
      $region10: #{tpu_custom_call.1} parent=5 // pred_check_branch
        %123 = sbr.rel (%p120) target = $region12
      $region11: #{tpu_custom_call.1} parent=5 // pred_region
        %s124 = ssub.s32 %s16, 1
        // Predicated region
        $region13: #{tpu_custom_call.1} parent=11 // pred_check
          %p125 = pneg %p63
        $region14: #{tpu_custom_call.1} parent=11 // pred_check_branch
          %127 = sbr.rel (%p125) target = $region16
        $region15: #{tpu_custom_call.1} parent=11 // pred_region
          %s129 = ssub.s32 1536, 1536
          %130 = vsyncadd [#allocation8], %s129
          %s131 = sshll.u32 [#allocation7], 4
          %s132 = int_to_ptr.vmem [resolvable:$true] %s131
          %137 = dma.hbm_to_vmem [thread:$0]  %s1, 1536, %s132, [#allocation8], 384, 384, 24
        $region16: #{tpu_custom_call.1} parent=11 // pred_fallthru
          _
        // Predicated region
        $region17: #{tpu_custom_call.1} parent=11 // pred_check
          %p138 = pneg %p84
        $region18: #{tpu_custom_call.1} parent=11 // pred_check_branch
          %140 = sbr.rel (%p138) target = $region20
        $region19: #{tpu_custom_call.1} parent=11 // pred_region
          _
        $region20: #{tpu_custom_call.1} parent=11 // pred_fallthru
          _
      $region12: #{tpu_custom_call.1} parent=5 // pred_fallthru
        _
      %p141 = scmp.lt.s32.totalorder %s16, 2
      // Predicated region
      $region21: #{tpu_custom_call.1} parent=5 // pred_check
        %p142 = pneg %p141
      $region22: #{tpu_custom_call.1} parent=5 // pred_check_branch
        %144 = sbr.rel (%p142) target = $region24
      $region23: #{tpu_custom_call.1} parent=5 // pred_region
        // Predicated region
        $region25: #{tpu_custom_call.1} parent=23 // pred_check
          %p145 = pneg %p36
        $region26: #{tpu_custom_call.1} parent=23 // pred_check_branch
          %147 = sbr.rel (%p145) target = $region28
        $region27: #{tpu_custom_call.1} parent=23 // pred_region
          %s148 = sand.u32 %s26, 1
          %s149 = scalar_lea.sflag [#allocation5], %s148
          %s150 = sand.u32 %s26, 1
          %s151 = smul.addr %s150, 64
          %s152 = scalar_lea.vmem [#allocation4], %s151
          %s154 = ssub.s32 1024, 1024
          %155 = vsyncadd %s149, %s154
          %s156 = smul.addr %s16, 8
          %s157 = smul.addr %s156, 128
          %s158 = scalar_lea.hbm %s0, %s157
          %s159 = sshll.u32 %s152, 4
          %s160 = int_to_ptr.vmem [resolvable:$true] %s159
          %165 = dma.hbm_to_vmem [thread:$0]  %s158, 1024, %s160, %s149, 256, 256, 16
        $region28: #{tpu_custom_call.1} parent=23 // pred_fallthru
          _
      $region24: #{tpu_custom_call.1} parent=5 // pred_fallthru
        _
      %p166 = scmp.le.s32.totalorder 1, %s16
      %p167 = scmp.lt.s32.totalorder %s16, 3
      %p168 = pnand %p166, %p167
      %p169 = pneg %p168
      // Predicated region
      $region29: #{tpu_custom_call.1} parent=5 // pred_check
        _
      $region30: #{tpu_custom_call.1} parent=5 // pred_check_branch
        %171 = sbr.rel (%p168) target = $region32
      $region31: #{tpu_custom_call.1} parent=5 // pred_region
        %s172 = ssub.s32 %s16, 1
        %s173 = sand.u32 %s29, 1
        %s174 = scalar_lea.sflag [#allocation5], %s173
        %s175 = sand.u32 %s29, 1
        %s176 = smul.addr %s175, 64
        %s177 = scalar_lea.vmem [#allocation4], %s176
        // Predicated region
        $region33: #{tpu_custom_call.1} parent=31 // pred_check
          %p178 = pneg %p42
        $region34: #{tpu_custom_call.1} parent=31 // pred_check_branch
          %180 = sbr.rel (%p178) target = $region36
        $region35: #{tpu_custom_call.1} parent=31 // pred_region
          %181 = dma.done %s174, 1024
        $region36: #{tpu_custom_call.1} parent=31 // pred_fallthru
          _
        // Predicated region
        $region37: #{tpu_custom_call.1} parent=31 // pred_check
          %p182 = pneg %p63
        $region38: #{tpu_custom_call.1} parent=31 // pred_check_branch
          %184 = sbr.rel (%p182) target = $region40
        $region39: #{tpu_custom_call.1} parent=31 // pred_region
          %185 = dma.done [#allocation8], 1536
        $region40: #{tpu_custom_call.1} parent=31 // pred_fallthru
          _
        %s186 = sand.u32 %s29, 1
        %s187 = scalar_lea.sflag [#allocation5], %s186
        %s188 = sand.u32 %s29, 1
        %s189 = smul.addr %s188, 64
        %s190 = scalar_lea.vmem [#allocation4], %s189
        %p191 = pneg %p42
        %p192 = pneg %p39
        %p193 = pneg %p63
        %p194 = pneg %p60
        %p195 = pneg %p84
        %p196 = pneg %p81
        %p197 = pneg %p110
        %p198 = pneg %p107
        %s199 = sand.u32 %s97, 1
        %s200 = scalar_lea.sflag [#allocation6], %s199
        %s201 = sand.u32 %s97, 1
        %s202 = smul.addr %s201, 64
        %s203 = scalar_lea.vmem [#allocation9], %s202
        %v204 = vld [vmem:[%s177] sm:$0xff]
        %v205 = vld [vmem:[%s177 + $0x8] sm:$0xff]
        %v206 = vld [vmem:[%s177 + $0x10] sm:$0xff]
        %v207 = vld [vmem:[%s177 + $0x18] sm:$0xff]
        %v208 = vld [vmem:[%s177 + $0x20] sm:$0xff]
        %v209 = vld [vmem:[%s177 + $0x28] sm:$0xff]
        %v210 = vld [vmem:[%s177 + $0x30] sm:$0xff]
        %v211 = vld [vmem:[%s177 + $0x38] sm:$0xff]
        %212 = vst [vmem:[#allocation2] sm:$0xff] 0.0
        %213 = vst [vmem:[#allocation2 + $0x20] sm:$0xff] 0.0
        %214 = vst [vmem:[#allocation2 + $0x40] sm:$0xff] 0.0
        %215 = vst [vmem:[#allocation2 + $0x60] sm:$0xff] 0.0
        %216 = vst [vmem:[#allocation2 + $0x18] sm:$0xff] 0.0
        %217 = vst [vmem:[#allocation2 + $0x38] sm:$0xff] 0.0
        %218 = vst [vmem:[#allocation2 + $0x58] sm:$0xff] 0.0
        %219 = vst [vmem:[#allocation2 + $0x78] sm:$0xff] 0.0
        %220 = vst [vmem:[#allocation2 + $0x8] sm:$0xff] %v204
        %221 = vst [vmem:[#allocation2 + $0x10] sm:$0xff] %v205
        %222 = vst [vmem:[#allocation2 + $0x28] sm:$0xff] %v206
        %223 = vst [vmem:[#allocation2 + $0x30] sm:$0xff] %v207
        %224 = vst [vmem:[#allocation2 + $0x48] sm:$0xff] %v208
        %225 = vst [vmem:[#allocation2 + $0x50] sm:$0xff] %v209
        %226 = vst [vmem:[#allocation2 + $0x68] sm:$0xff] %v210
        %227 = vst [vmem:[#allocation2 + $0x70] sm:$0xff] %v211
        %v228 = vlaneseq
        %v229 = vand.u32 %v228, 127
        %v230 = vadd.s32 %v229, 128
        %vm231 = vcmp.lt.s32.totalorder %v229, 0
        %v232 = vsub.s32 0, %v229
        %v233 = vsel %vm231, %v232, %v229
        %v234 = vshrl.u32 %v233, 4
        %v235 = vand.u32 %v233, 15
        %v236 = vsub.s32 0, %v235
        %v237 = vsel %vm231, %v236, %v235
        %vm238 = vcmp.lt.s32.totalorder %v230, 0
        %v239 = vsub.s32 0, %v230
        %v240 = vsel %vm238, %v239, %v230
        %v241 = vshrl.u32 %v240, 4
        %v242 = vand.u32 %v240, 15
        %v243 = vsub.s32 0, %v242
        %v244 = vsel %vm238, %v243, %v242
        %vm245 = vcmp.ne.s32.totalorder %v237, 0
        %vm246 = vcmp.ne.s32.totalorder %v244, 0
        %vm247 = vcmp.lt.s32.totalorder %v237, 0
        %vm248 = vcmp.lt.s32.totalorder %v244, 0
        %vm249 = vmand %vm247, %vm245
        %vm250 = vmand %vm248, %vm246
        %v251 = vadd.s32 %v237, 16
        %v252 = vadd.s32 %v244, 16
        %v253 = vsel %vm249, %v251, %v237
        %v254 = vsel %vm250, %v252, %v244
        %v255 = vld [vmem:[#allocation2] sm:$0xff]
        %v256 = vld [vmem:[#allocation2 + $0x8] sm:$0xff]
        %v257 = vld [vmem:[#allocation2 + $0x10] sm:$0xff]
        %v258 = vld [vmem:[#allocation2 + $0x20] sm:$0xff]
        %v259 = vld [vmem:[#allocation2 + $0x28] sm:$0xff]
        %v260 = vld [vmem:[#allocation2 + $0x30] sm:$0xff]
        %v261 = vld [vmem:[#allocation2 + $0x40] sm:$0xff]
        %v262 = vld [vmem:[#allocation2 + $0x48] sm:$0xff]
        %v263 = vld [vmem:[#allocation2 + $0x50] sm:$0xff]
        %v264 = vld [vmem:[#allocation2 + $0x60] sm:$0xff]
        %v265 = vld [vmem:[#allocation2 + $0x68] sm:$0xff]
        %v266 = vld [vmem:[#allocation2 + $0x70] sm:$0xff]
        %vm267 = vcmp.ge.s32.totalorder %v253, 1
        %vm268 = vcmp.ge.s32.totalorder %v254, 1
        %v269 = vsel %vm267, 1, 0
        %v270 = vsel %vm268, 1, 0
        %vm271 = vcmp.eq.s32.totalorder %v269, 1
        %vm272 = vcmp.eq.s32.totalorder %v270, 1
        %285 = vrot.lane.b32.xlu0 %v255, 17
        %v286 = vpop.permute.xlu0 %285
        %287 = vrot.lane.b32.xlu0 %v256, 17
        %v288 = vpop.permute.xlu0 %287
        %289 = vrot.lane.b32.xlu0 %v257, 17
        %v290 = vpop.permute.xlu0 %289
        %291 = vrot.lane.b32.xlu0 %v258, 17
        %v292 = vpop.permute.xlu0 %291
        %293 = vrot.lane.b32.xlu0 %v259, 17
        %v294 = vpop.permute.xlu0 %293
        %295 = vrot.lane.b32.xlu0 %v260, 17
        %v296 = vpop.permute.xlu0 %295
        %297 = vrot.lane.b32.xlu0 %v261, 17
        %v298 = vpop.permute.xlu0 %297
        %299 = vrot.lane.b32.xlu0 %v262, 17
        %v300 = vpop.permute.xlu0 %299
        %301 = vrot.lane.b32.xlu0 %v263, 17
        %v302 = vpop.permute.xlu0 %301
        %303 = vrot.lane.b32.xlu0 %v264, 17
        %v304 = vpop.permute.xlu0 %303
        %305 = vrot.lane.b32.xlu0 %v265, 17
        %v306 = vpop.permute.xlu0 %305
        %307 = vrot.lane.b32.xlu0 %v266, 17
        %v308 = vpop.permute.xlu0 %307
        %vm309 = vcmask 138240
        %v310 = vsel %vm309, %v286, %v288
        %v311 = vsel %vm309, %v288, %v290
        %v312 = vsel %vm309, %v292, %v294
        %v313 = vsel %vm309, %v294, %v296
        %v314 = vsel %vm309, %v298, %v300
        %v315 = vsel %vm309, %v300, %v302
        %v316 = vsel %vm309, %v304, %v306
        %v317 = vsel %vm309, %v306, %v308
        %v326 = vsel %vm271, %v310, 0.0
        %v327 = vsel %vm272, %v311, 0.0
        %v328 = vsel %vm271, %v312, 0.0
        %v329 = vsel %vm272, %v313, 0.0
        %v330 = vsel %vm271, %v314, 0.0
        %v331 = vsel %vm272, %v315, 0.0
        %v332 = vsel %vm271, %v316, 0.0
        %v333 = vsel %vm272, %v317, 0.0
        %334 = vst [vmem:[#allocation3] sm:$0xff] %v326
        %335 = vst [vmem:[#allocation3 + $0x8] sm:$0xff] %v327
        %336 = vst [vmem:[#allocation3 + $0x10] sm:$0xff] %v328
        %337 = vst [vmem:[#allocation3 + $0x18] sm:$0xff] %v329
        %338 = vst [vmem:[#allocation3 + $0x20] sm:$0xff] %v330
        %339 = vst [vmem:[#allocation3 + $0x28] sm:$0xff] %v331
        %340 = vst [vmem:[#allocation3 + $0x30] sm:$0xff] %v332
        %341 = vst [vmem:[#allocation3 + $0x38] sm:$0xff] %v333
        %v342 = vld [vmem:[#allocation2] sm:$0xff]
        %v343 = vld [vmem:[#allocation2 + $0x8] sm:$0xff]
        %v344 = vld [vmem:[#allocation2 + $0x10] sm:$0xff]
        %v345 = vld [vmem:[#allocation2 + $0x20] sm:$0xff]
        %v346 = vld [vmem:[#allocation2 + $0x28] sm:$0xff]
        %v347 = vld [vmem:[#allocation2 + $0x30] sm:$0xff]
        %v348 = vld [vmem:[#allocation2 + $0x40] sm:$0xff]
        %v349 = vld [vmem:[#allocation2 + $0x48] sm:$0xff]
        %v350 = vld [vmem:[#allocation2 + $0x50] sm:$0xff]
        %v351 = vld [vmem:[#allocation2 + $0x60] sm:$0xff]
        %v352 = vld [vmem:[#allocation2 + $0x68] sm:$0xff]
        %v353 = vld [vmem:[#allocation2 + $0x70] sm:$0xff]
        %366 = vrot.lane.b32.xlu0 %v342, 16
        %v367 = vpop.permute.xlu0 %366
        %368 = vrot.lane.b32.xlu0 %v343, 16
        %v369 = vpop.permute.xlu0 %368
        %370 = vrot.lane.b32.xlu0 %v344, 16
        %v371 = vpop.permute.xlu0 %370
        %372 = vrot.lane.b32.xlu0 %v345, 16
        %v373 = vpop.permute.xlu0 %372
        %374 = vrot.lane.b32.xlu0 %v346, 16
        %v375 = vpop.permute.xlu0 %374
        %376 = vrot.lane.b32.xlu0 %v347, 16
        %v377 = vpop.permute.xlu0 %376
        %378 = vrot.lane.b32.xlu0 %v348, 16
        %v379 = vpop.permute.xlu0 %378
        %380 = vrot.lane.b32.xlu0 %v349, 16
        %v381 = vpop.permute.xlu0 %380
        %382 = vrot.lane.b32.xlu0 %v350, 16
        %v383 = vpop.permute.xlu0 %382
        %384 = vrot.lane.b32.xlu0 %v351, 16
        %v385 = vpop.permute.xlu0 %384
        %386 = vrot.lane.b32.xlu0 %v352, 16
        %v387 = vpop.permute.xlu0 %386
        %388 = vrot.lane.b32.xlu0 %v353, 16
        %v389 = vpop.permute.xlu0 %388
        %vm390 = vcmask 130048
        %v391 = vsel %vm390, %v367, %v369
        %v392 = vsel %vm390, %v369, %v371
        %v393 = vsel %vm390, %v373, %v375
        %v394 = vsel %vm390, %v375, %v377
        %v395 = vsel %vm390, %v379, %v381
        %v396 = vsel %vm390, %v381, %v383
        %v397 = vsel %vm390, %v385, %v387
        %v398 = vsel %vm390, %v387, %v389
        %407 = vst [vmem:[#allocation3 + $0x40] sm:$0xff] %v391
        %408 = vst [vmem:[#allocation3 + $0x48] sm:$0xff] %v392
        %409 = vst [vmem:[#allocation3 + $0x50] sm:$0xff] %v393
        %410 = vst [vmem:[#allocation3 + $0x58] sm:$0xff] %v394
        %411 = vst [vmem:[#allocation3 + $0x60] sm:$0xff] %v395
        %412 = vst [vmem:[#allocation3 + $0x68] sm:$0xff] %v396
        %413 = vst [vmem:[#allocation3 + $0x70] sm:$0xff] %v397
        %414 = vst [vmem:[#allocation3 + $0x78] sm:$0xff] %v398
        %v415 = vld [vmem:[#allocation2] sm:$0xff]
        %v416 = vld [vmem:[#allocation2 + $0x8] sm:$0xff]
        %v417 = vld [vmem:[#allocation2 + $0x10] sm:$0xff]
        %v418 = vld [vmem:[#allocation2 + $0x20] sm:$0xff]
        %v419 = vld [vmem:[#allocation2 + $0x28] sm:$0xff]
        %v420 = vld [vmem:[#allocation2 + $0x30] sm:$0xff]
        %v421 = vld [vmem:[#allocation2 + $0x40] sm:$0xff]
        %v422 = vld [vmem:[#allocation2 + $0x48] sm:$0xff]
        %v423 = vld [vmem:[#allocation2 + $0x50] sm:$0xff]
        %v424 = vld [vmem:[#allocation2 + $0x60] sm:$0xff]
        %v425 = vld [vmem:[#allocation2 + $0x68] sm:$0xff]
        %v426 = vld [vmem:[#allocation2 + $0x70] sm:$0xff]
        %vm427 = vcmp.le.s32.totalorder %v253, 14
        %vm428 = vcmp.le.s32.totalorder %v254, 14
        %v429 = vsel %vm427, 1, 0
        %v430 = vsel %vm428, 1, 0
        %vm431 = vcmp.eq.s32.totalorder %v429, 1
        %vm432 = vcmp.eq.s32.totalorder %v430, 1
        %445 = vrot.lane.b32.xlu0 %v415, 15
        %v446 = vpop.permute.xlu0 %445
        %447 = vrot.lane.b32.xlu0 %v416, 15
        %v448 = vpop.permute.xlu0 %447
        %449 = vrot.lane.b32.xlu0 %v417, 15
        %v450 = vpop.permute.xlu0 %449
        %451 = vrot.lane.b32.xlu0 %v418, 15
        %v452 = vpop.permute.xlu0 %451
        %453 = vrot.lane.b32.xlu0 %v419, 15
        %v454 = vpop.permute.xlu0 %453
        %455 = vrot.lane.b32.xlu0 %v420, 15
        %v456 = vpop.permute.xlu0 %455
        %457 = vrot.lane.b32.xlu0 %v421, 15
        %v458 = vpop.permute.xlu0 %457
        %459 = vrot.lane.b32.xlu0 %v422, 15
        %v460 = vpop.permute.xlu0 %459
        %461 = vrot.lane.b32.xlu0 %v423, 15
        %v462 = vpop.permute.xlu0 %461
        %463 = vrot.lane.b32.xlu0 %v424, 15
        %v464 = vpop.permute.xlu0 %463
        %465 = vrot.lane.b32.xlu0 %v425, 15
        %v466 = vpop.permute.xlu0 %465
        %467 = vrot.lane.b32.xlu0 %v426, 15
        %v468 = vpop.permute.xlu0 %467
        %vm469 = vcmask 121856
        %v470 = vsel %vm469, %v446, %v448
        %v471 = vsel %vm469, %v448, %v450
        %v472 = vsel %vm469, %v452, %v454
        %v473 = vsel %vm469, %v454, %v456
        %v474 = vsel %vm469, %v458, %v460
        %v475 = vsel %vm469, %v460, %v462
        %v476 = vsel %vm469, %v464, %v466
        %v477 = vsel %vm469, %v466, %v468
        %v486 = vsel %vm431, %v470, 0.0
        %v487 = vsel %vm432, %v471, 0.0
        %v488 = vsel %vm431, %v472, 0.0
        %v489 = vsel %vm432, %v473, 0.0
        %v490 = vsel %vm431, %v474, 0.0
        %v491 = vsel %vm432, %v475, 0.0
        %v492 = vsel %vm431, %v476, 0.0
        %v493 = vsel %vm432, %v477, 0.0
        %494 = vst [vmem:[#allocation3 + $0x80] sm:$0xff] %v486
        %495 = vst [vmem:[#allocation3 + $0x88] sm:$0xff] %v487
        %496 = vst [vmem:[#allocation3 + $0x90] sm:$0xff] %v488
        %497 = vst [vmem:[#allocation3 + $0x98] sm:$0xff] %v489
        %498 = vst [vmem:[#allocation3 + $0xa0] sm:$0xff] %v490
        %499 = vst [vmem:[#allocation3 + $0xa8] sm:$0xff] %v491
        %500 = vst [vmem:[#allocation3 + $0xb0] sm:$0xff] %v492
        %501 = vst [vmem:[#allocation3 + $0xb8] sm:$0xff] %v493
        %v502 = vld [vmem:[#allocation2] sm:$0xff]
        %v503 = vld [vmem:[#allocation2 + $0x8] sm:$0xff]
        %v504 = vld [vmem:[#allocation2 + $0x10] sm:$0xff]
        %v505 = vld [vmem:[#allocation2 + $0x20] sm:$0xff]
        %v506 = vld [vmem:[#allocation2 + $0x28] sm:$0xff]
        %v507 = vld [vmem:[#allocation2 + $0x30] sm:$0xff]
        %v508 = vld [vmem:[#allocation2 + $0x40] sm:$0xff]
        %v509 = vld [vmem:[#allocation2 + $0x48] sm:$0xff]
        %v510 = vld [vmem:[#allocation2 + $0x50] sm:$0xff]
        %v511 = vld [vmem:[#allocation2 + $0x60] sm:$0xff]
        %v512 = vld [vmem:[#allocation2 + $0x68] sm:$0xff]
        %v513 = vld [vmem:[#allocation2 + $0x70] sm:$0xff]
        %526 = vrot.lane.b32.xlu0 %v502, 1
        %v527 = vpop.permute.xlu0 %526
        %528 = vrot.lane.b32.xlu0 %v503, 1
        %v529 = vpop.permute.xlu0 %528
        %530 = vrot.lane.b32.xlu0 %v504, 1
        %v531 = vpop.permute.xlu0 %530
        %532 = vrot.lane.b32.xlu0 %v505, 1
        %v533 = vpop.permute.xlu0 %532
        %534 = vrot.lane.b32.xlu0 %v506, 1
        %v535 = vpop.permute.xlu0 %534
        %536 = vrot.lane.b32.xlu0 %v507, 1
        %v537 = vpop.permute.xlu0 %536
        %538 = vrot.lane.b32.xlu0 %v508, 1
        %v539 = vpop.permute.xlu0 %538
        %540 = vrot.lane.b32.xlu0 %v509, 1
        %v541 = vpop.permute.xlu0 %540
        %542 = vrot.lane.b32.xlu0 %v510, 1
        %v543 = vpop.permute.xlu0 %542
        %544 = vrot.lane.b32.xlu0 %v511, 1
        %v545 = vpop.permute.xlu0 %544
        %546 = vrot.lane.b32.xlu0 %v512, 1
        %v547 = vpop.permute.xlu0 %546
        %548 = vrot.lane.b32.xlu0 %v513, 1
        %v549 = vpop.permute.xlu0 %548
        %vm550 = vcmask 7168
        %v551 = vsel %vm550, %v527, %v529
        %v552 = vsel %vm550, %v529, %v531
        %v553 = vsel %vm550, %v533, %v535
        %v554 = vsel %vm550, %v535, %v537
        %v555 = vsel %vm550, %v539, %v541
        %v556 = vsel %vm550, %v541, %v543
        %v557 = vsel %vm550, %v545, %v547
        %v558 = vsel %vm550, %v547, %v549
        %v567 = vsel %vm271, %v551, 0.0
        %v568 = vsel %vm272, %v552, 0.0
        %v569 = vsel %vm271, %v553, 0.0
        %v570 = vsel %vm272, %v554, 0.0
        %v571 = vsel %vm271, %v555, 0.0
        %v572 = vsel %vm272, %v556, 0.0
        %v573 = vsel %vm271, %v557, 0.0
        %v574 = vsel %vm272, %v558, 0.0
        %575 = vst [vmem:[#allocation3 + $0xc0] sm:$0xff] %v567
        %576 = vst [vmem:[#allocation3 + $0xc8] sm:$0xff] %v568
        %577 = vst [vmem:[#allocation3 + $0xd0] sm:$0xff] %v569
        %578 = vst [vmem:[#allocation3 + $0xd8] sm:$0xff] %v570
        %579 = vst [vmem:[#allocation3 + $0xe0] sm:$0xff] %v571
        %580 = vst [vmem:[#allocation3 + $0xe8] sm:$0xff] %v572
        %581 = vst [vmem:[#allocation3 + $0xf0] sm:$0xff] %v573
        %582 = vst [vmem:[#allocation3 + $0xf8] sm:$0xff] %v574
        %v583 = vld [vmem:[#allocation2 + $0x8] sm:$0xff]
        %v584 = vld [vmem:[#allocation2 + $0x10] sm:$0xff]
        %v585 = vld [vmem:[#allocation2 + $0x28] sm:$0xff]
        %v586 = vld [vmem:[#allocation2 + $0x30] sm:$0xff]
        %v587 = vld [vmem:[#allocation2 + $0x48] sm:$0xff]
        %v588 = vld [vmem:[#allocation2 + $0x50] sm:$0xff]
        %v589 = vld [vmem:[#allocation2 + $0x68] sm:$0xff]
        %v590 = vld [vmem:[#allocation2 + $0x70] sm:$0xff]
        %591 = vst [vmem:[#allocation3 + $0x100] sm:$0xff] %v583
        %592 = vst [vmem:[#allocation3 + $0x108] sm:$0xff] %v584
        %593 = vst [vmem:[#allocation3 + $0x110] sm:$0xff] %v585
        %594 = vst [vmem:[#allocation3 + $0x118] sm:$0xff] %v586
        %595 = vst [vmem:[#allocation3 + $0x120] sm:$0xff] %v587
        %596 = vst [vmem:[#allocation3 + $0x128] sm:$0xff] %v588
        %597 = vst [vmem:[#allocation3 + $0x130] sm:$0xff] %v589
        %598 = vst [vmem:[#allocation3 + $0x138] sm:$0xff] %v590
        %v599 = vld [vmem:[#allocation2 + $0x8] sm:$0xff]
        %v600 = vld [vmem:[#allocation2 + $0x10] sm:$0xff]
        %v601 = vld [vmem:[#allocation2 + $0x18] sm:$0xff]
        %v602 = vld [vmem:[#allocation2 + $0x28] sm:$0xff]
        %v603 = vld [vmem:[#allocation2 + $0x30] sm:$0xff]
        %v604 = vld [vmem:[#allocation2 + $0x38] sm:$0xff]
        %v605 = vld [vmem:[#allocation2 + $0x48] sm:$0xff]
        %v606 = vld [vmem:[#allocation2 + $0x50] sm:$0xff]
        %v607 = vld [vmem:[#allocation2 + $0x58] sm:$0xff]
        %v608 = vld [vmem:[#allocation2 + $0x68] sm:$0xff]
        %v609 = vld [vmem:[#allocation2 + $0x70] sm:$0xff]
        %v610 = vld [vmem:[#allocation2 + $0x78] sm:$0xff]
        %623 = vrot.lane.b32.xlu0 %v599, 127
        %v624 = vpop.permute.xlu0 %623
        %625 = vrot.lane.b32.xlu0 %v600, 127
        %v626 = vpop.permute.xlu0 %625
        %627 = vrot.lane.b32.xlu0 %v601, 127
        %v628 = vpop.permute.xlu0 %627
        %629 = vrot.lane.b32.xlu0 %v602, 127
        %v630 = vpop.permute.xlu0 %629
        %631 = vrot.lane.b32.xlu0 %v603, 127
        %v632 = vpop.permute.xlu0 %631
        %633 = vrot.lane.b32.xlu0 %v604, 127
        %v634 = vpop.permute.xlu0 %633
        %635 = vrot.lane.b32.xlu0 %v605, 127
        %v636 = vpop.permute.xlu0 %635
        %637 = vrot.lane.b32.xlu0 %v606, 127
        %v638 = vpop.permute.xlu0 %637
        %639 = vrot.lane.b32.xlu0 %v607, 127
        %v640 = vpop.permute.xlu0 %639
        %641 = vrot.lane.b32.xlu0 %v608, 127
        %v642 = vpop.permute.xlu0 %641
        %643 = vrot.lane.b32.xlu0 %v609, 127
        %v644 = vpop.permute.xlu0 %643
        %645 = vrot.lane.b32.xlu0 %v610, 127
        %v646 = vpop.permute.xlu0 %645
        %vm647 = vcmask 1039360
        %v648 = vsel %vm647, %v624, %v626
        %v649 = vsel %vm647, %v626, %v628
        %v650 = vsel %vm647, %v630, %v632
        %v651 = vsel %vm647, %v632, %v634
        %v652 = vsel %vm647, %v636, %v638
        %v653 = vsel %vm647, %v638, %v640
        %v654 = vsel %vm647, %v642, %v644
        %v655 = vsel %vm647, %v644, %v646
        %v664 = vsel %vm431, %v648, 0.0
        %v665 = vsel %vm432, %v649, 0.0
        %v666 = vsel %vm431, %v650, 0.0
        %v667 = vsel %vm432, %v651, 0.0
        %v668 = vsel %vm431, %v652, 0.0
        %v669 = vsel %vm432, %v653, 0.0
        %v670 = vsel %vm431, %v654, 0.0
        %v671 = vsel %vm432, %v655, 0.0
        %672 = vst [vmem:[#allocation3 + $0x140] sm:$0xff] %v664
        %673 = vst [vmem:[#allocation3 + $0x148] sm:$0xff] %v665
        %674 = vst [vmem:[#allocation3 + $0x150] sm:$0xff] %v666
        %675 = vst [vmem:[#allocation3 + $0x158] sm:$0xff] %v667
        %676 = vst [vmem:[#allocation3 + $0x160] sm:$0xff] %v668
        %677 = vst [vmem:[#allocation3 + $0x168] sm:$0xff] %v669
        %678 = vst [vmem:[#allocation3 + $0x170] sm:$0xff] %v670
        %679 = vst [vmem:[#allocation3 + $0x178] sm:$0xff] %v671
        %v680 = vld [vmem:[#allocation2 + $0x8] sm:$0xff]
        %v681 = vld [vmem:[#allocation2 + $0x10] sm:$0xff]
        %v682 = vld [vmem:[#allocation2 + $0x18] sm:$0xff]
        %v683 = vld [vmem:[#allocation2 + $0x28] sm:$0xff]
        %v684 = vld [vmem:[#allocation2 + $0x30] sm:$0xff]
        %v685 = vld [vmem:[#allocation2 + $0x38] sm:$0xff]
        %v686 = vld [vmem:[#allocation2 + $0x48] sm:$0xff]
        %v687 = vld [vmem:[#allocation2 + $0x50] sm:$0xff]
        %v688 = vld [vmem:[#allocation2 + $0x58] sm:$0xff]
        %v689 = vld [vmem:[#allocation2 + $0x68] sm:$0xff]
        %v690 = vld [vmem:[#allocation2 + $0x70] sm:$0xff]
        %v691 = vld [vmem:[#allocation2 + $0x78] sm:$0xff]
        %704 = vrot.lane.b32.xlu0 %v680, 113
        %v705 = vpop.permute.xlu0 %704
        %706 = vrot.lane.b32.xlu0 %v681, 113
        %v707 = vpop.permute.xlu0 %706
        %708 = vrot.lane.b32.xlu0 %v682, 113
        %v709 = vpop.permute.xlu0 %708
        %710 = vrot.lane.b32.xlu0 %v683, 113
        %v711 = vpop.permute.xlu0 %710
        %712 = vrot.lane.b32.xlu0 %v684, 113
        %v713 = vpop.permute.xlu0 %712
        %714 = vrot.lane.b32.xlu0 %v685, 113
        %v715 = vpop.permute.xlu0 %714
        %716 = vrot.lane.b32.xlu0 %v686, 113
        %v717 = vpop.permute.xlu0 %716
        %718 = vrot.lane.b32.xlu0 %v687, 113
        %v719 = vpop.permute.xlu0 %718
        %720 = vrot.lane.b32.xlu0 %v688, 113
        %v721 = vpop.permute.xlu0 %720
        %722 = vrot.lane.b32.xlu0 %v689, 113
        %v723 = vpop.permute.xlu0 %722
        %724 = vrot.lane.b32.xlu0 %v690, 113
        %v725 = vpop.permute.xlu0 %724
        %726 = vrot.lane.b32.xlu0 %v691, 113
        %v727 = vpop.permute.xlu0 %726
        %vm728 = vcmask 924672
        %v729 = vsel %vm728, %v705, %v707
        %v730 = vsel %vm728, %v707, %v709
        %v731 = vsel %vm728, %v711, %v713
        %v732 = vsel %vm728, %v713, %v715
        %v733 = vsel %vm728, %v717, %v719
        %v734 = vsel %vm728, %v719, %v721
        %v735 = vsel %vm728, %v723, %v725
        %v736 = vsel %vm728, %v725, %v727
        %v745 = vsel %vm271, %v729, 0.0
        %v746 = vsel %vm272, %v730, 0.0
        %v747 = vsel %vm271, %v731, 0.0
        %v748 = vsel %vm272, %v732, 0.0
        %v749 = vsel %vm271, %v733, 0.0
        %v750 = vsel %vm272, %v734, 0.0
        %v751 = vsel %vm271, %v735, 0.0
        %v752 = vsel %vm272, %v736, 0.0
        %753 = vst [vmem:[#allocation3 + $0x180] sm:$0xff] %v745
        %754 = vst [vmem:[#allocation3 + $0x188] sm:$0xff] %v746
        %755 = vst [vmem:[#allocation3 + $0x190] sm:$0xff] %v747
        %756 = vst [vmem:[#allocation3 + $0x198] sm:$0xff] %v748
        %757 = vst [vmem:[#allocation3 + $0x1a0] sm:$0xff] %v749
        %758 = vst [vmem:[#allocation3 + $0x1a8] sm:$0xff] %v750
        %759 = vst [vmem:[#allocation3 + $0x1b0] sm:$0xff] %v751
        %760 = vst [vmem:[#allocation3 + $0x1b8] sm:$0xff] %v752
        %v761 = vld [vmem:[#allocation2 + $0x8] sm:$0xff]
        %v762 = vld [vmem:[#allocation2 + $0x10] sm:$0xff]
        %v763 = vld [vmem:[#allocation2 + $0x18] sm:$0xff]
        %v764 = vld [vmem:[#allocation2 + $0x28] sm:$0xff]
        %v765 = vld [vmem:[#allocation2 + $0x30] sm:$0xff]
        %v766 = vld [vmem:[#allocation2 + $0x38] sm:$0xff]
        %v767 = vld [vmem:[#allocation2 + $0x48] sm:$0xff]
        %v768 = vld [vmem:[#allocation2 + $0x50] sm:$0xff]
        %v769 = vld [vmem:[#allocation2 + $0x58] sm:$0xff]
        %v770 = vld [vmem:[#allocation2 + $0x68] sm:$0xff]
        %v771 = vld [vmem:[#allocation2 + $0x70] sm:$0xff]
        %v772 = vld [vmem:[#allocation2 + $0x78] sm:$0xff]
        %785 = vrot.lane.b32.xlu0 %v761, 112
        %v786 = vpop.permute.xlu0 %785
        %787 = vrot.lane.b32.xlu0 %v762, 112
        %v788 = vpop.permute.xlu0 %787
        %789 = vrot.lane.b32.xlu0 %v763, 112
        %v790 = vpop.permute.xlu0 %789
        %791 = vrot.lane.b32.xlu0 %v764, 112
        %v792 = vpop.permute.xlu0 %791
        %793 = vrot.lane.b32.xlu0 %v765, 112
        %v794 = vpop.permute.xlu0 %793
        %795 = vrot.lane.b32.xlu0 %v766, 112
        %v796 = vpop.permute.xlu0 %795
        %797 = vrot.lane.b32.xlu0 %v767, 112
        %v798 = vpop.permute.xlu0 %797
        %799 = vrot.lane.b32.xlu0 %v768, 112
        %v800 = vpop.permute.xlu0 %799
        %801 = vrot.lane.b32.xlu0 %v769, 112
        %v802 = vpop.permute.xlu0 %801
        %803 = vrot.lane.b32.xlu0 %v770, 112
        %v804 = vpop.permute.xlu0 %803
        %805 = vrot.lane.b32.xlu0 %v771, 112
        %v806 = vpop.permute.xlu0 %805
        %807 = vrot.lane.b32.xlu0 %v772, 112
        %v808 = vpop.permute.xlu0 %807
        %vm809 = vcmask 916480
        %v810 = vsel %vm809, %v786, %v788
        %v811 = vsel %vm809, %v788, %v790
        %v812 = vsel %vm809, %v792, %v794
        %v813 = vsel %vm809, %v794, %v796
        %v814 = vsel %vm809, %v798, %v800
        %v815 = vsel %vm809, %v800, %v802
        %v816 = vsel %vm809, %v804, %v806
        %v817 = vsel %vm809, %v806, %v808
        %826 = vst [vmem:[#allocation3 + $0x1c0] sm:$0xff] %v810
        %827 = vst [vmem:[#allocation3 + $0x1c8] sm:$0xff] %v811
        %828 = vst [vmem:[#allocation3 + $0x1d0] sm:$0xff] %v812
        %829 = vst [vmem:[#allocation3 + $0x1d8] sm:$0xff] %v813
        %830 = vst [vmem:[#allocation3 + $0x1e0] sm:$0xff] %v814
        %831 = vst [vmem:[#allocation3 + $0x1e8] sm:$0xff] %v815
        %832 = vst [vmem:[#allocation3 + $0x1f0] sm:$0xff] %v816
        %833 = vst [vmem:[#allocation3 + $0x1f8] sm:$0xff] %v817
        %v834 = vld [vmem:[#allocation2 + $0x8] sm:$0xff]
        %v835 = vld [vmem:[#allocation2 + $0x10] sm:$0xff]
        %v836 = vld [vmem:[#allocation2 + $0x18] sm:$0xff]
        %v837 = vld [vmem:[#allocation2 + $0x28] sm:$0xff]
        %v838 = vld [vmem:[#allocation2 + $0x30] sm:$0xff]
        %v839 = vld [vmem:[#allocation2 + $0x38] sm:$0xff]
        %v840 = vld [vmem:[#allocation2 + $0x48] sm:$0xff]
        %v841 = vld [vmem:[#allocation2 + $0x50] sm:$0xff]
        %v842 = vld [vmem:[#allocation2 + $0x58] sm:$0xff]
        %v843 = vld [vmem:[#allocation2 + $0x68] sm:$0xff]
        %v844 = vld [vmem:[#allocation2 + $0x70] sm:$0xff]
        %v845 = vld [vmem:[#allocation2 + $0x78] sm:$0xff]
        %858 = vrot.lane.b32.xlu0 %v834, 111
        %v859 = vpop.permute.xlu0 %858
        %860 = vrot.lane.b32.xlu0 %v835, 111
        %v861 = vpop.permute.xlu0 %860
        %862 = vrot.lane.b32.xlu0 %v836, 111
        %v863 = vpop.permute.xlu0 %862
        %864 = vrot.lane.b32.xlu0 %v837, 111
        %v865 = vpop.permute.xlu0 %864
        %866 = vrot.lane.b32.xlu0 %v838, 111
        %v867 = vpop.permute.xlu0 %866
        %868 = vrot.lane.b32.xlu0 %v839, 111
        %v869 = vpop.permute.xlu0 %868
        %870 = vrot.lane.b32.xlu0 %v840, 111
        %v871 = vpop.permute.xlu0 %870
        %872 = vrot.lane.b32.xlu0 %v841, 111
        %v873 = vpop.permute.xlu0 %872
        %874 = vrot.lane.b32.xlu0 %v842, 111
        %v875 = vpop.permute.xlu0 %874
        %876 = vrot.lane.b32.xlu0 %v843, 111
        %v877 = vpop.permute.xlu0 %876
        %878 = vrot.lane.b32.xlu0 %v844, 111
        %v879 = vpop.permute.xlu0 %878
        %880 = vrot.lane.b32.xlu0 %v845, 111
        %v881 = vpop.permute.xlu0 %880
        %vm882 = vcmask 908288
        %v883 = vsel %vm882, %v859, %v861
        %v884 = vsel %vm882, %v861, %v863
        %v885 = vsel %vm882, %v865, %v867
        %v886 = vsel %vm882, %v867, %v869
        %v887 = vsel %vm882, %v871, %v873
        %v888 = vsel %vm882, %v873, %v875
        %v889 = vsel %vm882, %v877, %v879
        %v890 = vsel %vm882, %v879, %v881
        %v899 = vsel %vm431, %v883, 0.0
        %v900 = vsel %vm432, %v884, 0.0
        %v901 = vsel %vm431, %v885, 0.0
        %v902 = vsel %vm432, %v886, 0.0
        %v903 = vsel %vm431, %v887, 0.0
        %v904 = vsel %vm432, %v888, 0.0
        %v905 = vsel %vm431, %v889, 0.0
        %v906 = vsel %vm432, %v890, 0.0
        %907 = vst [vmem:[#allocation3 + $0x200] sm:$0xff] %v899
        %908 = vst [vmem:[#allocation3 + $0x208] sm:$0xff] %v900
        %909 = vst [vmem:[#allocation3 + $0x210] sm:$0xff] %v901
        %910 = vst [vmem:[#allocation3 + $0x218] sm:$0xff] %v902
        %911 = vst [vmem:[#allocation3 + $0x220] sm:$0xff] %v903
        %912 = vst [vmem:[#allocation3 + $0x228] sm:$0xff] %v904
        %913 = vst [vmem:[#allocation3 + $0x230] sm:$0xff] %v905
        %914 = vst [vmem:[#allocation3 + $0x238] sm:$0xff] %v906
        %v915 = vld [vmem:[#allocation7] sm:$0xff]
        %v916 = vld [vmem:[#allocation7 + $0x8] sm:$0xff]
        %v917 = vld [vmem:[#allocation7 + $0x10] sm:$0xff]
        %v918 = vld [vmem:[#allocation7 + $0x18] sm:$0xff]
        %v919 = vld [vmem:[#allocation7 + $0x20] sm:$0xff]
        %v920 = vld [vmem:[#allocation7 + $0x28] sm:$0xff]
        %v921 = vld [vmem:[#allocation7 + $0x30] sm:$0xff]
        %v922 = vld [vmem:[#allocation7 + $0x38] sm:$0xff]
        %v923 = vld [vmem:[#allocation7 + $0x40] sm:$0xff]
        %v924 = vld [vmem:[#allocation7 + $0x48] sm:$0xff]
        %v925 = vld [vmem:[#allocation7 + $0x50] sm:$0xff]
        %v926 = vld [vmem:[#allocation7 + $0x58] sm:$0xff]
        %v927 = vld [vmem:[#allocation3] sm:$0xff]
        %v928 = vld [vmem:[#allocation3 + $0x8] sm:$0xff]
        %v929 = vld [vmem:[#allocation3 + $0x10] sm:$0xff]
        %v930 = vld [vmem:[#allocation3 + $0x18] sm:$0xff]
        %v931 = vld [vmem:[#allocation3 + $0x20] sm:$0xff]
        %v932 = vld [vmem:[#allocation3 + $0x28] sm:$0xff]
        %v933 = vld [vmem:[#allocation3 + $0x30] sm:$0xff]
        %v934 = vld [vmem:[#allocation3 + $0x38] sm:$0xff]
        %v935 = vld [vmem:[#allocation3 + $0x40] sm:$0xff]
        %v936 = vld [vmem:[#allocation3 + $0x48] sm:$0xff]
        %v937 = vld [vmem:[#allocation3 + $0x50] sm:$0xff]
        %v938 = vld [vmem:[#allocation3 + $0x58] sm:$0xff]
        %v939 = vld [vmem:[#allocation3 + $0x60] sm:$0xff]
        %v940 = vld [vmem:[#allocation3 + $0x68] sm:$0xff]
        %v941 = vld [vmem:[#allocation3 + $0x70] sm:$0xff]
        %v942 = vld [vmem:[#allocation3 + $0x78] sm:$0xff]
        %v943 = vld [vmem:[#allocation3 + $0x80] sm:$0xff]
        %v944 = vld [vmem:[#allocation3 + $0x88] sm:$0xff]
        %v945 = vld [vmem:[#allocation3 + $0x90] sm:$0xff]
        %v946 = vld [vmem:[#allocation3 + $0x98] sm:$0xff]
        %v947 = vld [vmem:[#allocation3 + $0xa0] sm:$0xff]
        %v948 = vld [vmem:[#allocation3 + $0xa8] sm:$0xff]
        %v949 = vld [vmem:[#allocation3 + $0xb0] sm:$0xff]
        %v950 = vld [vmem:[#allocation3 + $0xb8] sm:$0xff]
        %v951 = vld [vmem:[#allocation3 + $0xc0] sm:$0xff]
        %v952 = vld [vmem:[#allocation3 + $0xc8] sm:$0xff]
        %v953 = vld [vmem:[#allocation3 + $0xd0] sm:$0xff]
        %v954 = vld [vmem:[#allocation3 + $0xd8] sm:$0xff]
        %v955 = vld [vmem:[#allocation3 + $0xe0] sm:$0xff]
        %v956 = vld [vmem:[#allocation3 + $0xe8] sm:$0xff]
        %v957 = vld [vmem:[#allocation3 + $0xf0] sm:$0xff]
        %v958 = vld [vmem:[#allocation3 + $0xf8] sm:$0xff]
        %v959 = vld [vmem:[#allocation3 + $0x100] sm:$0xff]
        %v960 = vld [vmem:[#allocation3 + $0x108] sm:$0xff]
        %v961 = vld [vmem:[#allocation3 + $0x110] sm:$0xff]
        %v962 = vld [vmem:[#allocation3 + $0x118] sm:$0xff]
        %v963 = vld [vmem:[#allocation3 + $0x120] sm:$0xff]
        %v964 = vld [vmem:[#allocation3 + $0x128] sm:$0xff]
        %v965 = vld [vmem:[#allocation3 + $0x130] sm:$0xff]
        %v966 = vld [vmem:[#allocation3 + $0x138] sm:$0xff]
        %v967 = vld [vmem:[#allocation3 + $0x140] sm:$0xff]
        %v968 = vld [vmem:[#allocation3 + $0x148] sm:$0xff]
        %v969 = vld [vmem:[#allocation3 + $0x150] sm:$0xff]
        %v970 = vld [vmem:[#allocation3 + $0x158] sm:$0xff]
        %v971 = vld [vmem:[#allocation3 + $0x160] sm:$0xff]
        %v972 = vld [vmem:[#allocation3 + $0x168] sm:$0xff]
        %v973 = vld [vmem:[#allocation3 + $0x170] sm:$0xff]
        %v974 = vld [vmem:[#allocation3 + $0x178] sm:$0xff]
        %v975 = vld [vmem:[#allocation3 + $0x180] sm:$0xff]
        %v976 = vld [vmem:[#allocation3 + $0x188] sm:$0xff]
        %v977 = vld [vmem:[#allocation3 + $0x190] sm:$0xff]
        %v978 = vld [vmem:[#allocation3 + $0x198] sm:$0xff]
        %v979 = vld [vmem:[#allocation3 + $0x1a0] sm:$0xff]
        %v980 = vld [vmem:[#allocation3 + $0x1a8] sm:$0xff]
        %v981 = vld [vmem:[#allocation3 + $0x1b0] sm:$0xff]
        %v982 = vld [vmem:[#allocation3 + $0x1b8] sm:$0xff]
        %v983 = vld [vmem:[#allocation3 + $0x1c0] sm:$0xff]
        %v984 = vld [vmem:[#allocation3 + $0x1c8] sm:$0xff]
        %v985 = vld [vmem:[#allocation3 + $0x1d0] sm:$0xff]
        %v986 = vld [vmem:[#allocation3 + $0x1d8] sm:$0xff]
        %v987 = vld [vmem:[#allocation3 + $0x1e0] sm:$0xff]
        %v988 = vld [vmem:[#allocation3 + $0x1e8] sm:$0xff]
        %v989 = vld [vmem:[#allocation3 + $0x1f0] sm:$0xff]
        %v990 = vld [vmem:[#allocation3 + $0x1f8] sm:$0xff]
        %v991 = vld [vmem:[#allocation3 + $0x200] sm:$0xff]
        %v992 = vld [vmem:[#allocation3 + $0x208] sm:$0xff]
        %v993 = vld [vmem:[#allocation3 + $0x210] sm:$0xff]
        %v994 = vld [vmem:[#allocation3 + $0x218] sm:$0xff]
        %v995 = vld [vmem:[#allocation3 + $0x220] sm:$0xff]
        %v996 = vld [vmem:[#allocation3 + $0x228] sm:$0xff]
        %v997 = vld [vmem:[#allocation3 + $0x230] sm:$0xff]
        %v998 = vld [vmem:[#allocation3 + $0x238] sm:$0xff]
        %v999 = vld [vmem:[%s2] sm:$0xff]
        %v1000 = vld [vmem:[%s2 + $0x8] sm:$0xff]
        %v1001 = vld [vmem:[%s2 + $0x10] sm:$0xff]
        %v1002 = vld [vmem:[%s2 + $0x18] sm:$0xff]
        %1004 = vset.pattern.permute.xlu0 0
        %1005 = vperm.xlu0 %1004, %v999
        %v1006 = vpop.permute.xlu0 %1005
        %1009 = vset.pattern.permute.xlu0 0
        %1010 = vperm.xlu0 %1009, %v1000
        %v1011 = vpop.permute.xlu0 %1010
        %1014 = vset.pattern.permute.xlu0 0
        %1015 = vperm.xlu0 %1014, %v1001
        %v1016 = vpop.permute.xlu0 %1015
        %1019 = vset.pattern.permute.xlu0 0
        %1020 = vperm.xlu0 %1019, %v1002
        %v1021 = vpop.permute.xlu0 %1020
        %vm1023 = vcmask 261120
        %v1025 = vsel %vm1023, %v917, 0
        %v1028 = vsel %vm1023, %v920, 0
        %v1031 = vsel %vm1023, %v923, 0
        %v1034 = vsel %vm1023, %v926, 0
        %1036 = vmatprep.subr.mxu0 %v928
        %1037 = vmatpush1.msra.mxu0 %v927
        %1038 = vmatprep.subr.mxu0 %v930
        %1039 = vmatpush1.msra.mxu0 %v929
        %1040 = vmatprep.subr.mxu0 %v932
        %1041 = vmatpush1.msra.mxu0 %v931
        %1042 = vmatprep.subr.mxu0 %v934
        %1043 = vmatpush1.msra.mxu0 %v933
        %1044 = vmatprep.subr.mxu0 %v936
        %1045 = vmatpush1.msra.mxu0 %v935
        %1046 = vmatprep.subr.mxu0 %v938
        %1047 = vmatpush1.msra.mxu0 %v937
        %1048 = vmatprep.subr.mxu0 %v940
        %1049 = vmatpush1.msra.mxu0 %v939
        %1050 = vmatprep.subr.mxu0 %v942
        %1051 = vmatpush1.msra.mxu0 %v941
        %1052 = vmatprep.subr.mxu0 %v944
        %1053 = vmatpush1.msra.mxu0 %v943
        %1054 = vmatprep.subr.mxu0 %v946
        %1055 = vmatpush1.msra.mxu0 %v945
        %1056 = vmatprep.subr.mxu0 %v948
        %1057 = vmatpush1.msra.mxu0 %v947
        %1058 = vmatprep.subr.mxu0 %v950
        %1059 = vmatpush1.msra.mxu0 %v949
        %1060 = vmatprep.subr.mxu0 %v952
        %1061 = vmatpush1.msra.mxu0 %v951
        %1062 = vmatprep.subr.mxu0 %v954
        %1063 = vmatpush1.msra.mxu0 %v953
        %1064 = vmatprep.subr.mxu0 %v956
        %1065 = vmatpush1.msra.mxu0 %v955
        %1066 = vmatprep.subr.mxu0 %v958
        %1067 = vmatpush1.msra.mxu0 %v957
        %1068 = vmatprep.subr.mxu0 %v960
        %1069 = vmatpush1.msra.mxu0 %v959
        %1070 = vmatprep.subr.mxu0 %v962
        %1071 = vmatpush1.msra.mxu0 %v961
        %1072 = vmatprep.subr.mxu0 %v964
        %1073 = vmatpush1.msra.mxu0 %v963
        %1074 = vmatprep.subr.mxu0 %v966
        %1075 = vmatpush1.msra.mxu0 %v965
        %1076 = vmatprep.subr.mxu0 %v968
        %1077 = vmatpush1.msra.mxu0 %v967
        %1078 = vmatprep.subr.mxu0 %v970
        %1079 = vmatpush1.msra.mxu0 %v969
        %1080 = vmatprep.subr.mxu0 %v972
        %1081 = vmatpush1.msra.mxu0 %v971
        %1082 = vmatprep.subr.mxu0 %v974
        %1083 = vmatpush1.msra.mxu0 %v973
        %1084 = vmatprep.subr.mxu0 %v976
        %1085 = vmatpush1.msra.mxu0 %v975
        %1086 = vmatprep.subr.mxu0 %v978
        %1087 = vmatpush1.msra.mxu0 %v977
        %1088 = vmatprep.subr.mxu0 %v980
        %1089 = vmatpush1.msra.mxu0 %v979
        %1090 = vmatprep.subr.mxu0 %v982
        %1091 = vmatpush1.msra.mxu0 %v981
        %1092 = vmatprep.subr.mxu0 %v984
        %1093 = vmatpush1.msra.mxu0 %v983
        %1094 = vmatprep.subr.mxu0 %v986
        %1095 = vmatpush1.msra.mxu0 %v985
        %1096 = vmatprep.subr.mxu0 %v988
        %1097 = vmatpush1.msra.mxu0 %v987
        %1098 = vmatprep.subr.mxu0 %v990
        %1099 = vmatpush1.msra.mxu0 %v989
        %1100 = vmatprep.mubr.f32.mxu0 %v916
        %1101 = vmatmul.mubr.f32.gmra.mrb[0].mxu0 %v915
        %v1102 = vpop.f32.mrb[0].mxu0
        %v1103 = vadd.f32 %v1006, %v1102
        %v1104 = vpop.f32.mrb[0].mxu0
        %v1105 = vadd.f32 %v1006, %v1104
        %1106 = vmatprep.mubr.f32.mxu0 %v919
        %1107 = vmatmul.mubr.f32.gmra.mrb[0].mxu0 %v918
        %v1108 = vpop.f32.mrb[0].mxu0
        %v1109 = vadd.f32 %v1011, %v1108
        %v1110 = vpop.f32.mrb[0].mxu0
        %v1111 = vadd.f32 %v1011, %v1110
        %1112 = vmatprep.mubr.f32.mxu0 %v922
        %1113 = vmatmul.mubr.f32.gmra.mrb[0].mxu0 %v921
        %v1114 = vpop.f32.mrb[0].mxu0
        %v1115 = vadd.f32 %v1016, %v1114
        %v1116 = vpop.f32.mrb[0].mxu0
        %v1117 = vadd.f32 %v1016, %v1116
        %1118 = vmatprep.mubr.f32.mxu0 %v925
        %1119 = vmatmul.mubr.f32.gmra.mrb[0].mxu0 %v924
        %v1120 = vpop.f32.mrb[0].mxu0
        %v1121 = vadd.f32 %v1021, %v1120
        %v1122 = vpop.f32.mrb[0].mxu0
        %v1123 = vadd.f32 %v1021, %v1122
        %1124 = vdwg.mxu0
        %1125 = vmatprep.subr.mxu0 %v992
        %1126 = vmatpush1.msra.mxu0 %v991
        %1127 = vmatprep.subr.mxu0 %v994
        %1128 = vmatpush1.msra.mxu0 %v993
        %1129 = vmatprep.subr.mxu0 %v996
        %1130 = vmatpush1.msra.mxu0 %v995
        %1131 = vmatprep.subr.mxu0 %v998
        %1132 = vmatpush1.msra.mxu0 %v997
        %1133 = vmatprep.subr.mxu0 0.0
        %1134 = vmatpush1.msra.mxu0 0.0
        %1135 = vmatprep.subr.mxu0 0.0
        %1136 = vmatpush1.msra.mxu0 0.0
        %1137 = vmatprep.subr.mxu0 0.0
        %1138 = vmatpush1.msra.mxu0 0.0
        %1139 = vmatprep.subr.mxu0 0.0
        %1140 = vmatpush1.msra.mxu0 0.0
        %1141 = vmatprep.subr.mxu0 0.0
        %1142 = vmatpush1.msra.mxu0 0.0
        %1143 = vmatprep.subr.mxu0 0.0
        %1144 = vmatpush1.msra.mxu0 0.0
        %1145 = vmatprep.subr.mxu0 0.0
        %1146 = vmatpush1.msra.mxu0 0.0
        %1147 = vmatprep.subr.mxu0 0.0
        %1148 = vmatpush1.msra.mxu0 0.0
        %1149 = vmatprep.subr.mxu0 0.0
        %1150 = vmatpush1.msra.mxu0 0.0
        %1151 = vmatprep.subr.mxu0 0.0
        %1152 = vmatpush1.msra.mxu0 0.0
        %1153 = vmatprep.subr.mxu0 0.0
        %1154 = vmatpush1.msra.mxu0 0.0
        %1155 = vmatprep.subr.mxu0 0.0
        %1156 = vmatpush1.msra.mxu0 0.0
        %1157 = vmatprep.subr.mxu0 0.0
        %1158 = vmatpush1.msra.mxu0 0.0
        %1159 = vmatprep.subr.mxu0 0.0
        %1160 = vmatpush1.msra.mxu0 0.0
        %1161 = vmatprep.subr.mxu0 0.0
        %1162 = vmatpush1.msra.mxu0 0.0
        %1163 = vmatprep.subr.mxu0 0.0
        %1164 = vmatpush1.msra.mxu0 0.0
        %1165 = vmatprep.subr.mxu0 0.0
        %1166 = vmatpush1.msra.mxu0 0.0
        %1167 = vmatprep.subr.mxu0 0.0
        %1168 = vmatpush1.msra.mxu0 0.0
        %1169 = vmatprep.subr.mxu0 0.0
        %1170 = vmatpush1.msra.mxu0 0.0
        %1171 = vmatprep.subr.mxu0 0.0
        %1172 = vmatpush1.msra.mxu0 0.0
        %1173 = vmatprep.subr.mxu0 0.0
        %1174 = vmatpush1.msra.mxu0 0.0
        %1175 = vmatprep.subr.mxu0 0.0
        %1176 = vmatpush1.msra.mxu0 0.0
        %1177 = vmatprep.subr.mxu0 0.0
        %1178 = vmatpush1.msra.mxu0 0.0
        %1179 = vmatprep.subr.mxu0 0.0
        %1180 = vmatpush1.msra.mxu0 0.0
        %1181 = vmatprep.subr.mxu0 0.0
        %1182 = vmatpush1.msra.mxu0 0.0
        %1183 = vmatprep.subr.mxu0 0.0
        %1184 = vmatpush1.msra.mxu0 0.0
        %1185 = vmatprep.subr.mxu0 0.0
        %1186 = vmatpush1.msra.mxu0 0.0
        %1187 = vmatprep.subr.mxu0 0.0
        %1188 = vmatpush1.msra.mxu0 0.0
        %1189 = vmatprep.mubr.f32.mxu0 0.0
        %1190 = vmatmul.mubr.f32.gmra.mrb[0].mxu0 %v1025
        %v1191 = vpop.f32.mrb[0].mxu0
        %v1192 = vadd.f32 %v1103, %v1191
        %v1193 = vpop.f32.mrb[0].mxu0
        %v1194 = vadd.f32 %v1105, %v1193
        %1195 = vmatprep.mubr.f32.mxu0 0.0
        %1196 = vmatmul.mubr.f32.gmra.mrb[0].mxu0 %v1028
        %v1197 = vpop.f32.mrb[0].mxu0
        %v1198 = vadd.f32 %v1109, %v1197
        %v1199 = vpop.f32.mrb[0].mxu0
        %v1200 = vadd.f32 %v1111, %v1199
        %1201 = vmatprep.mubr.f32.mxu0 0.0
        %1202 = vmatmul.mubr.f32.gmra.mrb[0].mxu0 %v1031
        %v1203 = vpop.f32.mrb[0].mxu0
        %v1204 = vadd.f32 %v1115, %v1203
        %v1205 = vpop.f32.mrb[0].mxu0
        %v1206 = vadd.f32 %v1117, %v1205
        %1207 = vmatprep.mubr.f32.mxu0 0.0
        %1208 = vmatmul.mubr.f32.gmra.mrb[0].mxu0 %v1034
        %v1209 = vpop.f32.mrb[0].mxu0
        %v1210 = vadd.f32 %v1121, %v1209
        %v1211 = vpop.f32.mrb[0].mxu0
        %v1212 = vadd.f32 %v1123, %v1211
        %1213 = vdwg.mxu0
        %v1214 = vsub.f32 0.0, %v1192
        %v1215 = vsub.f32 0.0, %v1194
        %v1216 = vsub.f32 0.0, %v1198
        %v1217 = vsub.f32 0.0, %v1200
        %v1218 = vsub.f32 0.0, %v1204
        %v1219 = vsub.f32 0.0, %v1206
        %v1220 = vsub.f32 0.0, %v1210
        %v1221 = vsub.f32 0.0, %v1212
        %v1222 = vmul.f32 %v1214, 1.442695
        %v1223 = vpow.pop %v1222
        %v1224 = vmul.f32 %v1215, 1.442695
        %v1225 = vpow.pop %v1224
        %v1226 = vmul.f32 %v1216, 1.442695
        %v1227 = vpow.pop %v1226
        %v1228 = vmul.f32 %v1217, 1.442695
        %v1229 = vpow.pop %v1228
        %v1230 = vmul.f32 %v1218, 1.442695
        %v1231 = vpow.pop %v1230
        %v1232 = vmul.f32 %v1219, 1.442695
        %v1233 = vpow.pop %v1232
        %v1234 = vmul.f32 %v1220, 1.442695
        %v1235 = vpow.pop %v1234
        %v1236 = vmul.f32 %v1221, 1.442695
        %v1237 = vpow.pop %v1236
        %v1238 = vadd.f32 %v1223, 1.0
        %v1239 = vadd.f32 %v1225, 1.0
        %v1240 = vadd.f32 %v1227, 1.0
        %v1241 = vadd.f32 %v1229, 1.0
        %v1242 = vadd.f32 %v1231, 1.0
        %v1243 = vadd.f32 %v1233, 1.0
        %v1244 = vadd.f32 %v1235, 1.0
        %v1245 = vadd.f32 %v1237, 1.0
        %v1246 = vrcp.pop %v1238
        %v1247 = vmul.f32 1.0, %v1246
        %v1248 = vrcp.pop %v1239
        %v1249 = vmul.f32 1.0, %v1248
        %v1250 = vrcp.pop %v1240
        %v1251 = vmul.f32 1.0, %v1250
        %v1252 = vrcp.pop %v1241
        %v1253 = vmul.f32 1.0, %v1252
        %v1254 = vrcp.pop %v1242
        %v1255 = vmul.f32 1.0, %v1254
        %v1256 = vrcp.pop %v1243
        %v1257 = vmul.f32 1.0, %v1256
        %v1258 = vrcp.pop %v1244
        %v1259 = vmul.f32 1.0, %v1258
        %v1260 = vrcp.pop %v1245
        %v1261 = vmul.f32 1.0, %v1260
        %v1262 = vmul.f32 %v1247, %v204
        %v1263 = vmul.f32 %v1249, %v205
        %v1264 = vmul.f32 %v1251, %v206
        %v1265 = vmul.f32 %v1253, %v207
        %v1266 = vmul.f32 %v1255, %v208
        %v1267 = vmul.f32 %v1257, %v209
        %v1268 = vmul.f32 %v1259, %v210
        %v1269 = vmul.f32 %v1261, %v211
        %1270 = vst [vmem:[%s203] sm:$0xff] %v1262
        %1271 = vst [vmem:[%s203 + $0x8] sm:$0xff] %v1263
        %1272 = vst [vmem:[%s203 + $0x10] sm:$0xff] %v1264
        %1273 = vst [vmem:[%s203 + $0x18] sm:$0xff] %v1265
        %1274 = vst [vmem:[%s203 + $0x20] sm:$0xff] %v1266
        %1275 = vst [vmem:[%s203 + $0x28] sm:$0xff] %v1267
        %1276 = vst [vmem:[%s203 + $0x30] sm:$0xff] %v1268
        %1277 = vst [vmem:[%s203 + $0x38] sm:$0xff] %v1269
        %s1278 = sand.u32 %s97, 1
        %s1279 = scalar_lea.sflag [#allocation6], %s1278
        %s1280 = sand.u32 %s97, 1
        %s1281 = smul.addr %s1280, 64
        %s1282 = scalar_lea.vmem [#allocation9], %s1281
        // Predicated region
        $region41: #{tpu_custom_call.1} parent=31 // pred_check
          %p1283 = pneg %p107
        $region42: #{tpu_custom_call.1} parent=31 // pred_check_branch
          %1285 = sbr.rel (%p1283) target = $region44
        $region43: #{tpu_custom_call.1} parent=31 // pred_region
          %s1287 = ssub.s32 1024, 1024
          %1288 = vsyncadd %s1279, %s1287
          %s1289 = smul.addr %s21, 8
          %s1290 = smul.addr %s1289, 128
          %s1291 = scalar_lea.hbm %s3, %s1290
          %s1292 = sshll.u32 %s1282, 4
          %s1293 = int_to_ptr.vmem [resolvable:$true] %s1292
          %1298 = dma.vmem_to_hbm [thread:$0]  %s1293, 1024, %s1291, %s1279, 256, 256, 16
        $region44: #{tpu_custom_call.1} parent=31 // pred_fallthru
          _
      $region32: #{tpu_custom_call.1} parent=5 // pred_fallthru
        _
      %p1299 = scmp.le.s32.totalorder 2, %s16
      // Predicated region
      $region45: #{tpu_custom_call.1} parent=5 // pred_check
        %p1300 = pneg %p1299
      $region46: #{tpu_custom_call.1} parent=5 // pred_check_branch
        %1302 = sbr.rel (%p1300) target = $region48
      $region47: #{tpu_custom_call.1} parent=5 // pred_region
        %s1303 = ssub.s32 %s16, 2
        // Predicated region
        $region49: #{tpu_custom_call.1} parent=47 // pred_check
          %p1304 = pneg %p113
        $region50: #{tpu_custom_call.1} parent=47 // pred_check_branch
          %1306 = sbr.rel (%p1304) target = $region52
        $region51: #{tpu_custom_call.1} parent=47 // pred_region
          %s1307 = sand.u32 %s98, 1
          %s1308 = scalar_lea.sflag [#allocation6], %s1307
          %s1309 = sand.u32 %s98, 1
          %s1310 = smul.addr %s1309, 64
          %s1311 = scalar_lea.vmem [#allocation9], %s1310
          %1312 = dma.done %s1308, 1024
        $region52: #{tpu_custom_call.1} parent=47 // pred_fallthru
          _
      $region48: #{tpu_custom_call.1} parent=5 // pred_fallthru
        _
    $region6: #{tpu_custom_call.1} parent=1 // loop_footer
      %s20 = sadd.s32 1, %s16
    $region7: #{tpu_custom_call.1} parent=1 // loop_footer_branch
      %15 = sbr.rel target = $region3
    $region8: #{tpu_custom_call.1} parent=1 // loop_exit
      _
    %1313 = vsyncpa [#allocation5], 1
    %s1314 = scalar_lea.sflag [#allocation5], 1
    %1315 = vsyncpa %s1314, 1
    %1316 = vsyncpa [#allocation8], 1
    %1317 = vsyncpa [#allocation6], 1
    %s1318 = scalar_lea.sflag [#allocation6], 1
    %1319 = vsyncpa %s1318, 1

</llo_original>
